<compile_context>
chip_gen: v5e
topology: v5e:2x2
jax: 0.10.0
libtpu: 0.0.40
codegen_flags: <defaults>
</compile_context>

<pallas_src>
import jax
import jax.numpy as jnp
from jax import lax
from jax.experimental import pallas as pl
from jax.experimental.pallas import tpu as pltpu

HIDDEN = 768
NUM_CLASSES = 2
PAD_CLASSES = 128  # lane-pad the 2-wide classifier output for a lane-dense store


def _round_up(x, m):
    return (x + m - 1) // m * m


def _vmem_capacity_bytes():
    try:
        return int(pltpu.get_tpu_info().vmem_capacity_bytes)
    except Exception:
        return 128 * 1024 * 1024  # v5e/v6e default if the query is unavailable


def bert_classifier_kernel(emb_ref, wp_ref, bp_ref, wc_ref, bc_ref, out_ref, acc_ref):
    # emb_ref : [TB, TS, H]  bf16  embeddings, already scaled by mask/count (wrapper)
    # wp_ref  : [H, H]       bf16  BERT pooler weight (dense + tanh)
    # bp_ref  : [1, H]       f32   pooler bias
    # wc_ref  : [H, 128]     bf16  classifier weight (cols >= NUM_CLASSES are zero)
    # bc_ref  : [1, 128]     f32   classifier bias (lane-padded)
    # out_ref : [TB, 128]    f32   relu(logits); only first NUM_CLASSES cols meaningful
    # acc_ref : [TB, H]      f32   VMEM scratch: running mean-pool sum over seq tiles
    j = pl.program_id(1)

    @pl.when(j == 0)
    def _init():
        acc_ref[...] = jnp.zeros_like(acc_ref)

    block_b, block_s, _ = emb_ref.shape
    # Chunked reduction over the seq tile: widen only an 8/32-sublane chunk to f32
    # at a time so no full f32 copy of the bf16 tile is materialized in VMEM.
    chunk_s = 32 if block_s % 32 == 0 else 8
    nchunks = block_s // chunk_s
    if nchunks == 1:
        acc_ref[...] += jnp.sum(emb_ref[...].astype(jnp.float32), axis=1)
    else:
        def body(c, acc):
            start = pl.multiple_of(c * chunk_s, chunk_s)
            blk = emb_ref[:, pl.ds(start, chunk_s), :].astype(jnp.float32)
            return acc + jnp.sum(blk, axis=1)

        acc_ref[...] += lax.fori_loop(
            0, nchunks, body,
            jnp.zeros((block_b, HIDDEN), jnp.float32), unroll=True)

    @pl.when(j == pl.num_programs(1) - 1)
    def _finalize():
        # acc already holds the masked MEAN pool (mask/count folded in by the wrapper)
        seq_summary = acc_ref[...].astype(jnp.bfloat16)                    # [TB, H]

        # BERT pooler: dense(768 -> 768) + tanh   (bf16 MXU, f32 accumulate)
        pooled = jnp.tanh(
            jnp.dot(seq_summary, wp_ref[...], preferred_element_type=jnp.float32)
            + bp_ref[...])

        # dropout(p=0.5): identity at inference (PyTorch eval semantics)
        dropped = pooled

        # classifier Linear(768, 2) + ReLU  (output lane-padded to 128)
        logits = (jnp.dot(dropped.astype(jnp.bfloat16), wc_ref[...],
                          preferred_element_type=jnp.float32)
                  + bc_ref[...])
        out_ref[...] = jnp.maximum(logits, 0.0)


def make_params(key, vocab_size):
    k_emb, k_wp, k_bp, k_wc, k_bc = jax.random.split(key, 5)
    emb_table = (jax.random.normal(k_emb, (vocab_size, HIDDEN), jnp.float32)
                 * 0.02).astype(jnp.bfloat16)
    w_pool = (jax.random.normal(k_wp, (HIDDEN, HIDDEN), jnp.float32)
              * 0.02).astype(jnp.bfloat16)
    b_pool = jax.random.normal(k_bp, (1, HIDDEN), jnp.float32) * 0.02
    # nn.Linear(768, 2): weight [2, 768], bias [2]; stored transposed and lane-padded
    # to 128 output columns ONCE at param-build time (zeros beyond column 2).
    w_cls = jax.random.normal(k_wc, (HIDDEN, NUM_CLASSES), jnp.float32) * 0.02
    b_cls = jax.random.normal(k_bc, (1, NUM_CLASSES), jnp.float32) * 0.02
    w_cls_pad = (jnp.zeros((HIDDEN, PAD_CLASSES), jnp.float32)
                 .at[:, :NUM_CLASSES].set(w_cls).astype(jnp.bfloat16))
    b_cls_pad = jnp.zeros((1, PAD_CLASSES), jnp.float32).at[:, :NUM_CLASSES].set(b_cls)
    return dict(embedding=emb_table, w_pool=w_pool, b_pool=b_pool,
                w_cls=w_cls_pad, b_cls=b_cls_pad)


def _select_tiles(B, S):
    """Generation-aware tile / VMEM-limit selection (v5e/v6e vs v7x)."""
    vmem_cap = _vmem_capacity_bytes()
    small_vmem = vmem_cap <= 96 * 1024 * 1024          # v7x-like: 64 MiB / TensorCore

    if small_vmem:
        tile_budget = 12 * 1024 * 1024                 # emb tile (double-buffered: 24)
        block_b_max = 16
    else:                                              # v5e/v6e: 128 MiB VMEM, go big
        tile_budget = 24 * 1024 * 1024                 # emb tile (double-buffered: 48)
        block_b_max = 64

    block_b = min(block_b_max, _round_up(B, 8))
    if small_vmem:
        # v7x has 2 TensorCores per chip: keep >= 2 tiles on the 'parallel' batch
        # axis whenever the batch allows it so both cores get work.
        while block_b > 8 and _round_up(B, block_b) // block_b < 2:
            block_b //= 2

    max_rows = max(8, (tile_budget // (block_b * HIDDEN * 2)) // 8 * 8)
    block_s = max(8, min(_round_up(S, 8), max_rows, 512))

    # Leave headroom for the double-buffered emb tile, the (constant, double-buffered)
    # weight blocks (~2.7 MiB), the f32 accumulator and the chunked-reduce intermediate.
    vmem_limit = min(vmem_cap * 3 // 4, 96 * 1024 * 1024)
    return block_b, block_s, vmem_limit


def bert_classifier_forward(input_ids, attention_mask, params):
    # TODO(synk): the full multi-layer pretrained BERT transformer encoder is out of
    # scope; the sequence summary is an embedding lookup + masked mean pool + pooler.
    B, S = input_ids.shape
    block_b, block_s, vmem_limit = _select_tiles(B, S)
    B_pad = _round_up(B, block_b)
    S_pad = _round_up(S, block_s)

    # Pad ids/mask BEFORE the gather so the fused gather writes the padded layout once.
    ids = jnp.zeros((B_pad, S_pad), input_ids.dtype).at[:B, :S].set(input_ids)
    mask = jnp.zeros((B_pad, S_pad), jnp.float32).at[:B, :S].set(
        attention_mask.astype(jnp.float32))

    # Fold the attention mask and the EXACT 1/count of the mean pool into the gather
    # write-out (fuses into the gather under jit): the kernel then streams one
    # pre-scaled bf16 [B, S, H] tensor and just sums it.  No mask/count kernel inputs,
    # no lane-padded [TB, TS, 1] mask blocks, no in-kernel reciprocal.
    count = jnp.maximum(jnp.sum(mask, axis=1, keepdims=True), 1.0)      # [B_pad, 1]
    scale = (mask / count)[:, :, None]                                   # f32, exact
    emb = (jnp.take(params["embedding"], ids, axis=0).astype(jnp.float32)
           * scale).astype(jnp.bfloat16)                                 # [B_pad,S_pad,H]

    grid = (B_pad // block_b, S_pad // block_s)

    grid_spec = pltpu.PrefetchScalarGridSpec(
        num_scalar_prefetch=0,
        grid=grid,
        in_specs=[
            pl.BlockSpec((block_b, block_s, HIDDEN), lambda i, j: (i, j, 0)),  # emb
            # Constant-index weight blocks: DMA'd once (block index never changes);
            # their default double-buffer VMEM is included in the tile budget above.
            pl.BlockSpec((HIDDEN, HIDDEN), lambda i, j: (0, 0)),               # w_pool
            pl.BlockSpec((1, HIDDEN), lambda i, j: (0, 0)),                    # b_pool
            pl.BlockSpec((HIDDEN, PAD_CLASSES), lambda i, j: (0, 0)),          # w_cls
            pl.BlockSpec((1, PAD_CLASSES), lambda i, j: (0, 0)),               # b_cls
        ],
        out_specs=pl.BlockSpec((block_b, PAD_CLASSES), lambda i, j: (i, 0)),
        scratch_shapes=[pltpu.VMEM((block_b, HIDDEN), jnp.float32)],
    )

    flops = (2 * B_pad * S_pad * HIDDEN            # streaming sum
             + 2 * B_pad * HIDDEN * HIDDEN         # pooler matmul
             + 2 * B_pad * HIDDEN * PAD_CLASSES)   # classifier matmul
    transcendentals = B_pad * HIDDEN               # tanh
    bytes_accessed = (B_pad * S_pad * HIDDEN * 2                      # emb (bf16), dominant
                      + HIDDEN * HIDDEN * 2 + HIDDEN * 4              # pooler params
                      + HIDDEN * PAD_CLASSES * 2 + PAD_CLASSES * 4    # classifier params
                      + B_pad * PAD_CLASSES * 4)                      # output

    out_padded = pl.pallas_call(
        bert_classifier_kernel,
        out_shape=jax.ShapeDtypeStruct((B_pad, PAD_CLASSES), jnp.float32),
        grid_spec=grid_spec,
        compiler_params=pltpu.CompilerParams(
            dimension_semantics=("parallel", "arbitrary"),
            vmem_limit_bytes=vmem_limit),
        cost_estimate=pl.CostEstimate(flops=flops,
                                      transcendentals=transcendentals,
                                      bytes_accessed=bytes_accessed),
    )(emb, params["w_pool"], params["b_pool"], params["w_cls"], params["b_cls"])

    return out_padded[:B, :NUM_CLASSES]                                # [B, 2]


if __name__ == "__main__":
    key = jax.random.PRNGKey(0)
    k_params, k_ids = jax.random.split(key)

    batch, seq, vocab = 2, 8, 64
    params = make_params(k_params, vocab)

    input_ids = jax.random.randint(k_ids, (batch, seq), 0, vocab, dtype=jnp.int32)
    attention_mask = jnp.array(
        [[1, 1, 1, 1, 1, 1, 1, 1],
         [1, 1, 1, 1, 1, 1, 0, 0]], dtype=jnp.int32)

    # jit the wrapper so the mask/(1/count) scaling fuses into the gather write-out.
    fwd = jax.jit(bert_classifier_forward)
    out = jax.block_until_ready(fwd(input_ids, attention_mask, params))

    assert out.shape == (batch, NUM_CLASSES)
    assert bool(jnp.all(out >= 0.0))  # ReLU output is non-negative
    print("KERNEL_OK")
</pallas_src>

<mosaic_0001>
module attributes {stable_mosaic.version = 11 : i64} {
  func.func @bert_classifier_kernel(%arg0: i32, %arg1: i32, %arg2: memref<8x8x768xbf16, #tpu.memory_space<vmem>>, %arg3: memref<768x768xbf16, #tpu.memory_space<vmem>>, %arg4: memref<1x768xf32, #tpu.memory_space<vmem>>, %arg5: memref<768x128xbf16, #tpu.memory_space<vmem>>, %arg6: memref<1x128xf32, #tpu.memory_space<vmem>>, %arg7: memref<8x128xf32, #tpu.memory_space<vmem>>, %arg8: memref<8x768xf32, #tpu.memory_space<vmem>>) attributes {dimension_semantics = [#tpu.dimension_semantics<parallel>, #tpu.dimension_semantics<arbitrary>], iteration_bounds = array<i64: 1, 1>, scalar_prefetch = 0 : i64, scratch_operands = 1 : i64, tpu.core_type = #tpu.core_type<tc>, window_params = [{transform_indices = @transform_0, window_bounds = array<i64: 8, 8, 768>}, {pipeline_mode = #tpu.pipeline_mode<synchronous>, transform_indices = @transform_1, window_bounds = array<i64: 768, 768>}, {pipeline_mode = #tpu.pipeline_mode<synchronous>, transform_indices = @transform_2, window_bounds = array<i64: 1, 768>}, {pipeline_mode = #tpu.pipeline_mode<synchronous>, transform_indices = @transform_3, window_bounds = array<i64: 768, 128>}, {pipeline_mode = #tpu.pipeline_mode<synchronous>, transform_indices = @transform_4, window_bounds = array<i64: 1, 128>}, {transform_indices = @transform_5, window_bounds = array<i64: 8, 128>}]} {
    %c0_i32 = arith.constant 0 : i32
    %0 = arith.cmpi eq, %arg1, %c0_i32 : i32
    %1 = arith.extui %0 : i1 to i32
    %c0_i32_0 = arith.constant 0 : i32
    %2 = arith.cmpi ne, %1, %c0_i32_0 : i32
    scf.if %2 {
      %cst_9 = arith.constant 0.000000e+00 : f32
      %12 = vector.broadcast %cst_9 : f32 to vector<8x768xf32>
      %c0_10 = arith.constant 0 : index
      %c0_11 = arith.constant 0 : index
      %13 = vector.load %arg8[%c0_10, %c0_11] : memref<8x768xf32, #tpu.memory_space<vmem>>, vector<8x768xf32>
      tpu.vector_store %arg8[%c0_10, %c0_11], %12 {strides = array<i32>} : memref<8x768xf32, #tpu.memory_space<vmem>>, vector<8x768xf32>,
    } else {
    }
    %c0 = arith.constant 0 : index
    %c0_1 = arith.constant 0 : index
    %3 = vector.load %arg8[%c0, %c0_1] : memref<8x768xf32, #tpu.memory_space<vmem>>, vector<8x768xf32>
    %c0_2 = arith.constant 0 : index
    %c0_3 = arith.constant 0 : index
    %c0_4 = arith.constant 0 : index
    %4 = vector.load %arg2[%c0_2, %c0_3, %c0_4] : memref<8x8x768xbf16, #tpu.memory_space<vmem>>, vector<8x8x768xbf16>
    %5 = arith.extf %4 : vector<8x8x768xbf16> to vector<8x8x768xf32>
    %cst = arith.constant dense<0.000000e+00> : vector<8x768xf32>
    %6 = vector.multi_reduction <add>, %5, %cst [1] : vector<8x8x768xf32> to vector<8x768xf32>
    %7 = arith.addf %3, %6 : vector<8x768xf32>
    %c0_5 = arith.constant 0 : index
    %c0_6 = arith.constant 0 : index
    %8 = vector.load %arg8[%c0_5, %c0_6] : memref<8x768xf32, #tpu.memory_space<vmem>>, vector<8x768xf32>
    tpu.vector_store %arg8[%c0_5, %c0_6], %7 {strides = array<i32>} : memref<8x768xf32, #tpu.memory_space<vmem>>, vector<8x768xf32>,
    %c0_i32_7 = arith.constant 0 : i32
    %9 = arith.cmpi eq, %arg1, %c0_i32_7 : i32
    %10 = arith.extui %9 : i1 to i32
    %c0_i32_8 = arith.constant 0 : i32
    %11 = arith.cmpi ne, %10, %c0_i32_8 : i32
    scf.if %11 {
      %c0_9 = arith.constant 0 : index
      %c0_10 = arith.constant 0 : index
      %12 = vector.load %arg8[%c0_9, %c0_10] : memref<8x768xf32, #tpu.memory_space<vmem>>, vector<8x768xf32>
      %13 = arith.truncf %12 : vector<8x768xf32> to vector<8x768xbf16>
      %c0_11 = arith.constant 0 : index
      %c0_12 = arith.constant 0 : index
      %14 = vector.load %arg3[%c0_11, %c0_12] : memref<768x768xbf16, #tpu.memory_space<vmem>>, vector<768x768xbf16>
      %cst_13 = arith.constant dense<0.000000e+00> : vector<8x768xf32>
      %15 = tpu.matmul %13, %14, %cst_13 {dimension_numbers = #tpu.dot_dimension_numbers<[1], [0], [0], [1], [0, 0, 1, 1], [], []>} : vector<8x768xbf16>, vector<768x768xbf16>, vector<8x768xf32> -> vector<8x768xf32>
      %c0_14 = arith.constant 0 : index
      %c0_15 = arith.constant 0 : index
      %16 = vector.load %arg4[%c0_14, %c0_15] : memref<1x768xf32, #tpu.memory_space<vmem>>, vector<1x768xf32>
      %17 = vector.broadcast %16 : vector<1x768xf32> to vector<8x768xf32>
      %18 = arith.addf %15, %17 : vector<8x768xf32>
      %19 = math.tanh %18 : vector<8x768xf32>
      %20 = arith.truncf %19 : vector<8x768xf32> to vector<8x768xbf16>
      %c0_16 = arith.constant 0 : index
      %c0_17 = arith.constant 0 : index
      %21 = vector.load %arg5[%c0_16, %c0_17] : memref<768x128xbf16, #tpu.memory_space<vmem>>, vector<768x128xbf16>
      %cst_18 = arith.constant dense<0.000000e+00> : vector<8x128xf32>
      %22 = tpu.matmul %20, %21, %cst_18 {dimension_numbers = #tpu.dot_dimension_numbers<[1], [0], [0], [1], [0, 0, 1, 1], [], []>} : vector<8x768xbf16>, vector<768x128xbf16>, vector<8x128xf32> -> vector<8x128xf32>
      %c0_19 = arith.constant 0 : index
      %c0_20 = arith.constant 0 : index
      %23 = vector.load %arg6[%c0_19, %c0_20] : memref<1x128xf32, #tpu.memory_space<vmem>>, vector<1x128xf32>
      %24 = vector.broadcast %23 : vector<1x128xf32> to vector<8x128xf32>
      %25 = arith.addf %22, %24 : vector<8x128xf32>
      %cst_21 = arith.constant 0.000000e+00 : f32
      %26 = vector.broadcast %cst_21 : f32 to vector<8x128xf32>
      %27 = arith.maximumf %25, %26 : vector<8x128xf32>
      %c0_22 = arith.constant 0 : index
      %c0_23 = arith.constant 0 : index
      %28 = vector.load %arg7[%c0_22, %c0_23] : memref<8x128xf32, #tpu.memory_space<vmem>>, vector<8x128xf32>
      tpu.vector_store %arg7[%c0_22, %c0_23], %27 {strides = array<i32>} : memref<8x128xf32, #tpu.memory_space<vmem>>, vector<8x128xf32>,
    } else {
    }
    return
  }
  func.func @transform_0(%arg0: i32, %arg1: i32) -> (i32, i32, i32) {
    %c0_i32 = arith.constant 0 : i32
    %c0_i32_0 = arith.constant 0 : i32
    return %arg0, %arg1, %c0_i32 : i32, i32, i32
  }
  func.func @transform_1(%arg0: i32, %arg1: i32) -> (i32, i32) {
    %c0_i32 = arith.constant 0 : i32
    %c0_i32_0 = arith.constant 0 : i32
    %c0_i32_1 = arith.constant 0 : i32
    return %c0_i32, %c0_i32_0 : i32, i32
  }
  func.func @transform_2(%arg0: i32, %arg1: i32) -> (i32, i32) {
    %c0_i32 = arith.constant 0 : i32
    %c0_i32_0 = arith.constant 0 : i32
    %c0_i32_1 = arith.constant 0 : i32
    return %c0_i32, %c0_i32_0 : i32, i32
  }
  func.func @transform_3(%arg0: i32, %arg1: i32) -> (i32, i32) {
    %c0_i32 = arith.constant 0 : i32
    %c0_i32_0 = arith.constant 0 : i32
    %c0_i32_1 = arith.constant 0 : i32
    return %c0_i32, %c0_i32_0 : i32, i32
  }
  func.func @transform_4(%arg0: i32, %arg1: i32) -> (i32, i32) {
    %c0_i32 = arith.constant 0 : i32
    %c0_i32_0 = arith.constant 0 : i32
    %c0_i32_1 = arith.constant 0 : i32
    return %c0_i32, %c0_i32_0 : i32, i32
  }
  func.func @transform_5(%arg0: i32, %arg1: i32) -> (i32, i32) {
    %c0_i32 = arith.constant 0 : i32
    %c0_i32_0 = arith.constant 0 : i32
    return %arg0, %c0_i32 : i32, i32
  }
}

</mosaic_0001>

<llo_original>
// kernel: bert_classifier_forward.1
$region0: #{bert_classifier_forward.1}
  #allocation0 [shape = 'u32[]', space=smem, size = 0x4, offset = 0x4, fixed_abs, tag = 'smem constant byte address 0x4 - core index']
  #allocation1 [shape = 'u32[72,128]{1,0:T(1,128)}', space=vmem, size = 0x9000, scoped, tag = 'internal scratch']
  #allocation2 [shape = 'f32[8,768]{1,0:T(8,128)}', space=vmem, size = 0x6000, scoped, tag = 'scratch operand']
  %s0 = inlined_call_operand.vmem [shape: bf16[8,8,768], index: 0, kind: input, shape index: {}]
  %s1 = inlined_call_operand.hbm [shape: bf16[768,768], index: 1, kind: input, shape index: {}]
  %s2 = inlined_call_operand.hbm [shape: f32[1,768], index: 2, kind: input, shape index: {}]
  %s3 = inlined_call_operand.vmem [shape: bf16[768,128], index: 3, kind: input, shape index: {}]
  %s4 = inlined_call_operand.hbm [shape: f32[1,128], index: 4, kind: input, shape index: {}]
  %s5 = inlined_call_operand.vmem [shape: f32[8,128], index: 5, kind: output, shape index: {}]
  %s6 = sld [smem:[#allocation0]]
  $region50: #{bert_classifier_forward.1} parent=0
    _
  %s8 = ssub.s32 1, %s6
  %s9 = scalar_select 0, %s8, %s6
  $region1: #{bert_classifier_forward.1} parent=0
    #allocation3 [shape = 'u8[1179648]{0}', space=vmem, size = 0x120000, scoped, tag = 'input window, operand 1, single buffered']
    #allocation4 [shape = 's32[1]{0}', space=sflag, size = 0x4, scoped, tag = 'scoped memory for bert_classifier_forward.1']
    #allocation5 [shape = 'u8[3072]{0}', space=vmem, size = 0xc00, scoped, tag = 'input window, operand 2, single buffered']
    #allocation6 [shape = 's32[1]{0}', space=sflag, size = 0x4, scoped, tag = 'scoped memory for bert_classifier_forward.1']
    #allocation7 [shape = 'u8[512]{0}', space=vmem, size = 0x400, scoped, tag = 'input window, operand 4, single buffered']
    %10 = vsyncpa [#allocation4], 0
    %11 = vsyncpa [#allocation6], 0
    // Predicated region
    $region2: #{bert_classifier_forward.1} parent=1 // pred_check
      _
    $region3: #{bert_classifier_forward.1} parent=1 // pred_check_branch
      %13 = sbr.rel (0) target = $region5
    $region4: #{bert_classifier_forward.1} parent=1 // pred_region
      _
    $region5: #{bert_classifier_forward.1} parent=1 // pred_fallthru
      _
    // Predicated region
    $region6: #{bert_classifier_forward.1} parent=1 // pred_check
      _
    $region7: #{bert_classifier_forward.1} parent=1 // pred_check_branch
      %15 = sbr.rel (0) target = $region9
    $region8: #{bert_classifier_forward.1} parent=1 // pred_region
      %17 = vsyncadd [#allocation4], 0
      %s18 = sshll.u32 %s1, 4
      %s19 = int_to_ptr.hbm [resolvable:$true] %s18
      %s20 = sshll.u32 [#allocation3], 4
      %s21 = int_to_ptr.vmem [resolvable:$true] %s20
      %26 = dma.hbm_to_vmem [thread:$0]  %s19, 36864, %s21, [#allocation4], 384, 384, 24
    $region9: #{bert_classifier_forward.1} parent=1 // pred_fallthru
      _
    // Predicated region
    $region10: #{bert_classifier_forward.1} parent=1 // pred_check
      _
    $region11: #{bert_classifier_forward.1} parent=1 // pred_check_branch
      %28 = sbr.rel (0) target = $region13
    $region12: #{bert_classifier_forward.1} parent=1 // pred_region
      %30 = vsyncadd [#allocation6], 0
      %s32 = sshll.u32 %s2, 4
      %s33 = int_to_ptr.hbm [resolvable:$true] %s32
      %s34 = sshll.u32 [#allocation5], 4
      %s35 = int_to_ptr.vmem [resolvable:$true] %s34
      %37 = dma.hbm_to_vmem [thread:$0]  %s33, 96, %s35, [#allocation6]
    $region13: #{bert_classifier_forward.1} parent=1 // pred_fallthru
      _
    // Predicated region
    $region14: #{bert_classifier_forward.1} parent=1 // pred_check
      _
    $region15: #{bert_classifier_forward.1} parent=1 // pred_check_branch
      %39 = sbr.rel (0) target = $region17
    $region16: #{bert_classifier_forward.1} parent=1 // pred_region
      _
    $region17: #{bert_classifier_forward.1} parent=1 // pred_fallthru
      _
    // Predicated region
    $region18: #{bert_classifier_forward.1} parent=1 // pred_check
      _
    $region19: #{bert_classifier_forward.1} parent=1 // pred_check_branch
      %41 = sbr.rel (0) target = $region21
    $region20: #{bert_classifier_forward.1} parent=1 // pred_region
      %43 = vsyncadd [#allocation6], 0
      %s45 = sshll.u32 %s4, 4
      %s46 = int_to_ptr.hbm [resolvable:$true] %s45
      %s47 = sshll.u32 [#allocation7], 4
      %s48 = int_to_ptr.vmem [resolvable:$true] %s47
      %50 = dma.hbm_to_vmem [thread:$0]  %s46, 16, %s48, [#allocation6]
    $region21: #{bert_classifier_forward.1} parent=1 // pred_fallthru
      _
    // Predicated region
    $region22: #{bert_classifier_forward.1} parent=1 // pred_check
      _
    $region23: #{bert_classifier_forward.1} parent=1 // pred_check_branch
      %52 = sbr.rel (0) target = $region25
    $region24: #{bert_classifier_forward.1} parent=1 // pred_region
      %54 = dma.done [#allocation4], 36864
    $region25: #{bert_classifier_forward.1} parent=1 // pred_fallthru
      _
    // Predicated region
    $region26: #{bert_classifier_forward.1} parent=1 // pred_check
      _
    $region27: #{bert_classifier_forward.1} parent=1 // pred_check_branch
      %56 = sbr.rel (0) target = $region29
    $region28: #{bert_classifier_forward.1} parent=1 // pred_region
      %58 = dma.done [#allocation6], 96
    $region29: #{bert_classifier_forward.1} parent=1 // pred_fallthru
      _
    // Predicated region
    $region30: #{bert_classifier_forward.1} parent=1 // pred_check
      _
    $region31: #{bert_classifier_forward.1} parent=1 // pred_check_branch
      %60 = sbr.rel (0) target = $region33
    $region32: #{bert_classifier_forward.1} parent=1 // pred_region
      %62 = dma.done [#allocation6], 16
    $region33: #{bert_classifier_forward.1} parent=1 // pred_fallthru
      _
    %p63 = scmp.eq.s32.totalorder 0, 0
    // Predicated region
    $region34: #{bert_classifier_forward.1} parent=1 // pred_check
      %p64 = pneg %p63
    $region35: #{bert_classifier_forward.1} parent=1 // pred_check_branch
      %66 = sbr.rel (%p64) target = $region37
    $region36: #{bert_classifier_forward.1} parent=1 // pred_region
      %67 = vst [vmem:[#allocation2] sm:$0xff] 0.0
      %68 = vst [vmem:[#allocation2 + $0x8] sm:$0xff] 0.0
      %69 = vst [vmem:[#allocation2 + $0x10] sm:$0xff] 0.0
      %70 = vst [vmem:[#allocation2 + $0x18] sm:$0xff] 0.0
      %71 = vst [vmem:[#allocation2 + $0x20] sm:$0xff] 0.0
      %72 = vst [vmem:[#allocation2 + $0x28] sm:$0xff] 0.0
    $region37: #{bert_classifier_forward.1} parent=1 // pred_fallthru
      _
    %v73 = vld [vmem:[#allocation2] sm:$0xff]
    %v74 = vld [vmem:[#allocation2 + $0x8] sm:$0xff]
    %v75 = vld [vmem:[#allocation2 + $0x10] sm:$0xff]
    %v76 = vld [vmem:[#allocation2 + $0x18] sm:$0xff]
    %v77 = vld [vmem:[#allocation2 + $0x20] sm:$0xff]
    %v78 = vld [vmem:[#allocation2 + $0x28] sm:$0xff]
    %v79 = vld [vmem:[%s0] sm:$0xff]
    %v80 = vld [vmem:[%s0 + $0x8] sm:$0xff]
    %v81 = vld [vmem:[%s0 + $0x10] sm:$0xff]
    %v82 = vld [vmem:[%s0 + $0x18] sm:$0xff]
    %v83 = vld [vmem:[%s0 + $0x20] sm:$0xff]
    %v84 = vld [vmem:[%s0 + $0x28] sm:$0xff]
    %v85 = vld [vmem:[%s0 + $0x30] sm:$0xff]
    %v86 = vld [vmem:[%s0 + $0x38] sm:$0xff]
    %v87 = vld [vmem:[%s0 + $0x40] sm:$0xff]
    %v88 = vld [vmem:[%s0 + $0x48] sm:$0xff]
    %v89 = vld [vmem:[%s0 + $0x50] sm:$0xff]
    %v90 = vld [vmem:[%s0 + $0x58] sm:$0xff]
    %v91 = vld [vmem:[%s0 + $0x60] sm:$0xff]
    %v92 = vld [vmem:[%s0 + $0x68] sm:$0xff]
    %v93 = vld [vmem:[%s0 + $0x70] sm:$0xff]
    %v94 = vld [vmem:[%s0 + $0x78] sm:$0xff]
    %v95 = vld [vmem:[%s0 + $0x80] sm:$0xff]
    %v96 = vld [vmem:[%s0 + $0x88] sm:$0xff]
    %v97 = vld [vmem:[%s0 + $0x90] sm:$0xff]
    %v98 = vld [vmem:[%s0 + $0x98] sm:$0xff]
    %v99 = vld [vmem:[%s0 + $0xa0] sm:$0xff]
    %v100 = vld [vmem:[%s0 + $0xa8] sm:$0xff]
    %v101 = vld [vmem:[%s0 + $0xb0] sm:$0xff]
    %v102 = vld [vmem:[%s0 + $0xb8] sm:$0xff]
    %v103 = vunpack.c.l.bf16 %v79
    %v104 = vunpack.c.h.bf16 %v79
    %v105 = vunpack.c.l.bf16 %v80
    %v106 = vunpack.c.h.bf16 %v80
    %v107 = vunpack.c.l.bf16 %v81
    %v108 = vunpack.c.h.bf16 %v81
    %v109 = vunpack.c.l.bf16 %v82
    %v110 = vunpack.c.h.bf16 %v82
    %v111 = vunpack.c.l.bf16 %v83
    %v112 = vunpack.c.h.bf16 %v83
    %v113 = vunpack.c.l.bf16 %v84
    %v114 = vunpack.c.h.bf16 %v84
    %v115 = vunpack.c.l.bf16 %v85
    %v116 = vunpack.c.h.bf16 %v85
    %v117 = vunpack.c.l.bf16 %v86
    %v118 = vunpack.c.h.bf16 %v86
    %v119 = vunpack.c.l.bf16 %v87
    %v120 = vunpack.c.h.bf16 %v87
    %v121 = vunpack.c.l.bf16 %v88
    %v122 = vunpack.c.h.bf16 %v88
    %v123 = vunpack.c.l.bf16 %v89
    %v124 = vunpack.c.h.bf16 %v89
    %v125 = vunpack.c.l.bf16 %v90
    %v126 = vunpack.c.h.bf16 %v90
    %v127 = vunpack.c.l.bf16 %v91
    %v128 = vunpack.c.h.bf16 %v91
    %v129 = vunpack.c.l.bf16 %v92
    %v130 = vunpack.c.h.bf16 %v92
    %v131 = vunpack.c.l.bf16 %v93
    %v132 = vunpack.c.h.bf16 %v93
    %v133 = vunpack.c.l.bf16 %v94
    %v134 = vunpack.c.h.bf16 %v94
    %v135 = vunpack.c.l.bf16 %v95
    %v136 = vunpack.c.h.bf16 %v95
    %v137 = vunpack.c.l.bf16 %v96
    %v138 = vunpack.c.h.bf16 %v96
    %v139 = vunpack.c.l.bf16 %v97
    %v140 = vunpack.c.h.bf16 %v97
    %v141 = vunpack.c.l.bf16 %v98
    %v142 = vunpack.c.h.bf16 %v98
    %v143 = vunpack.c.l.bf16 %v99
    %v144 = vunpack.c.h.bf16 %v99
    %v145 = vunpack.c.l.bf16 %v100
    %v146 = vunpack.c.h.bf16 %v100
    %v147 = vunpack.c.l.bf16 %v101
    %v148 = vunpack.c.h.bf16 %v101
    %v149 = vunpack.c.l.bf16 %v102
    %v150 = vunpack.c.h.bf16 %v102
    %v151 = vrot.slane %v103, 4
    %v152 = vadd.f32 %v103, %v151
    %v153 = vrot.slane %v152, 2
    %v154 = vadd.f32 %v152, %v153
    %v155 = vrot.slane %v154, 1
    %v156 = vadd.f32 %v154, %v155
    %v157 = vrot.slane %v104, 4
    %v158 = vadd.f32 %v104, %v157
    %v159 = vrot.slane %v158, 2
    %v160 = vadd.f32 %v158, %v159
    %v161 = vrot.slane %v160, 1
    %v162 = vadd.f32 %v160, %v161
    %v163 = vrot.slane %v105, 4
    %v164 = vadd.f32 %v105, %v163
    %v165 = vrot.slane %v164, 2
    %v166 = vadd.f32 %v164, %v165
    %v167 = vrot.slane %v166, 1
    %v168 = vadd.f32 %v166, %v167
    %v169 = vrot.slane %v106, 4
    %v170 = vadd.f32 %v106, %v169
    %v171 = vrot.slane %v170, 2
    %v172 = vadd.f32 %v170, %v171
    %v173 = vrot.slane %v172, 1
    %v174 = vadd.f32 %v172, %v173
    %v175 = vrot.slane %v107, 4
    %v176 = vadd.f32 %v107, %v175
    %v177 = vrot.slane %v176, 2
    %v178 = vadd.f32 %v176, %v177
    %v179 = vrot.slane %v178, 1
    %v180 = vadd.f32 %v178, %v179
    %v181 = vrot.slane %v108, 4
    %v182 = vadd.f32 %v108, %v181
    %v183 = vrot.slane %v182, 2
    %v184 = vadd.f32 %v182, %v183
    %v185 = vrot.slane %v184, 1
    %v186 = vadd.f32 %v184, %v185
    %v187 = vrot.slane %v109, 4
    %v188 = vadd.f32 %v109, %v187
    %v189 = vrot.slane %v188, 2
    %v190 = vadd.f32 %v188, %v189
    %v191 = vrot.slane %v190, 1
    %v192 = vadd.f32 %v190, %v191
    %v193 = vrot.slane %v110, 4
    %v194 = vadd.f32 %v110, %v193
    %v195 = vrot.slane %v194, 2
    %v196 = vadd.f32 %v194, %v195
    %v197 = vrot.slane %v196, 1
    %v198 = vadd.f32 %v196, %v197
    %v199 = vrot.slane %v111, 4
    %v200 = vadd.f32 %v111, %v199
    %v201 = vrot.slane %v200, 2
    %v202 = vadd.f32 %v200, %v201
    %v203 = vrot.slane %v202, 1
    %v204 = vadd.f32 %v202, %v203
    %v205 = vrot.slane %v112, 4
    %v206 = vadd.f32 %v112, %v205
    %v207 = vrot.slane %v206, 2
    %v208 = vadd.f32 %v206, %v207
    %v209 = vrot.slane %v208, 1
    %v210 = vadd.f32 %v208, %v209
    %v211 = vrot.slane %v113, 4
    %v212 = vadd.f32 %v113, %v211
    %v213 = vrot.slane %v212, 2
    %v214 = vadd.f32 %v212, %v213
    %v215 = vrot.slane %v214, 1
    %v216 = vadd.f32 %v214, %v215
    %v217 = vrot.slane %v114, 4
    %v218 = vadd.f32 %v114, %v217
    %v219 = vrot.slane %v218, 2
    %v220 = vadd.f32 %v218, %v219
    %v221 = vrot.slane %v220, 1
    %v222 = vadd.f32 %v220, %v221
    %v223 = vrot.slane %v115, 4
    %v224 = vadd.f32 %v115, %v223
    %v225 = vrot.slane %v224, 2
    %v226 = vadd.f32 %v224, %v225
    %v227 = vrot.slane %v226, 1
    %v228 = vadd.f32 %v226, %v227
    %v229 = vrot.slane %v116, 4
    %v230 = vadd.f32 %v116, %v229
    %v231 = vrot.slane %v230, 2
    %v232 = vadd.f32 %v230, %v231
    %v233 = vrot.slane %v232, 1
    %v234 = vadd.f32 %v232, %v233
    %v235 = vrot.slane %v117, 4
    %v236 = vadd.f32 %v117, %v235
    %v237 = vrot.slane %v236, 2
    %v238 = vadd.f32 %v236, %v237
    %v239 = vrot.slane %v238, 1
    %v240 = vadd.f32 %v238, %v239
    %v241 = vrot.slane %v118, 4
    %v242 = vadd.f32 %v118, %v241
    %v243 = vrot.slane %v242, 2
    %v244 = vadd.f32 %v242, %v243
    %v245 = vrot.slane %v244, 1
    %v246 = vadd.f32 %v244, %v245
    %v247 = vrot.slane %v119, 4
    %v248 = vadd.f32 %v119, %v247
    %v249 = vrot.slane %v248, 2
    %v250 = vadd.f32 %v248, %v249
    %v251 = vrot.slane %v250, 1
    %v252 = vadd.f32 %v250, %v251
    %v253 = vrot.slane %v120, 4
    %v254 = vadd.f32 %v120, %v253
    %v255 = vrot.slane %v254, 2
    %v256 = vadd.f32 %v254, %v255
    %v257 = vrot.slane %v256, 1
    %v258 = vadd.f32 %v256, %v257
    %v259 = vrot.slane %v121, 4
    %v260 = vadd.f32 %v121, %v259
    %v261 = vrot.slane %v260, 2
    %v262 = vadd.f32 %v260, %v261
    %v263 = vrot.slane %v262, 1
    %v264 = vadd.f32 %v262, %v263
    %v265 = vrot.slane %v122, 4
    %v266 = vadd.f32 %v122, %v265
    %v267 = vrot.slane %v266, 2
    %v268 = vadd.f32 %v266, %v267
    %v269 = vrot.slane %v268, 1
    %v270 = vadd.f32 %v268, %v269
    %v271 = vrot.slane %v123, 4
    %v272 = vadd.f32 %v123, %v271
    %v273 = vrot.slane %v272, 2
    %v274 = vadd.f32 %v272, %v273
    %v275 = vrot.slane %v274, 1
    %v276 = vadd.f32 %v274, %v275
    %v277 = vrot.slane %v124, 4
    %v278 = vadd.f32 %v124, %v277
    %v279 = vrot.slane %v278, 2
    %v280 = vadd.f32 %v278, %v279
    %v281 = vrot.slane %v280, 1
    %v282 = vadd.f32 %v280, %v281
    %v283 = vrot.slane %v125, 4
    %v284 = vadd.f32 %v125, %v283
    %v285 = vrot.slane %v284, 2
    %v286 = vadd.f32 %v284, %v285
    %v287 = vrot.slane %v286, 1
    %v288 = vadd.f32 %v286, %v287
    %v289 = vrot.slane %v126, 4
    %v290 = vadd.f32 %v126, %v289
    %v291 = vrot.slane %v290, 2
    %v292 = vadd.f32 %v290, %v291
    %v293 = vrot.slane %v292, 1
    %v294 = vadd.f32 %v292, %v293
    %v295 = vrot.slane %v127, 4
    %v296 = vadd.f32 %v127, %v295
    %v297 = vrot.slane %v296, 2
    %v298 = vadd.f32 %v296, %v297
    %v299 = vrot.slane %v298, 1
    %v300 = vadd.f32 %v298, %v299
    %v301 = vrot.slane %v128, 4
    %v302 = vadd.f32 %v128, %v301
    %v303 = vrot.slane %v302, 2
    %v304 = vadd.f32 %v302, %v303
    %v305 = vrot.slane %v304, 1
    %v306 = vadd.f32 %v304, %v305
    %v307 = vrot.slane %v129, 4
    %v308 = vadd.f32 %v129, %v307
    %v309 = vrot.slane %v308, 2
    %v310 = vadd.f32 %v308, %v309
    %v311 = vrot.slane %v310, 1
    %v312 = vadd.f32 %v310, %v311
    %v313 = vrot.slane %v130, 4
    %v314 = vadd.f32 %v130, %v313
    %v315 = vrot.slane %v314, 2
    %v316 = vadd.f32 %v314, %v315
    %v317 = vrot.slane %v316, 1
    %v318 = vadd.f32 %v316, %v317
    %v319 = vrot.slane %v131, 4
    %v320 = vadd.f32 %v131, %v319
    %v321 = vrot.slane %v320, 2
    %v322 = vadd.f32 %v320, %v321
    %v323 = vrot.slane %v322, 1
    %v324 = vadd.f32 %v322, %v323
    %v325 = vrot.slane %v132, 4
    %v326 = vadd.f32 %v132, %v325
    %v327 = vrot.slane %v326, 2
    %v328 = vadd.f32 %v326, %v327
    %v329 = vrot.slane %v328, 1
    %v330 = vadd.f32 %v328, %v329
    %v331 = vrot.slane %v133, 4
    %v332 = vadd.f32 %v133, %v331
    %v333 = vrot.slane %v332, 2
    %v334 = vadd.f32 %v332, %v333
    %v335 = vrot.slane %v334, 1
    %v336 = vadd.f32 %v334, %v335
    %v337 = vrot.slane %v134, 4
    %v338 = vadd.f32 %v134, %v337
    %v339 = vrot.slane %v338, 2
    %v340 = vadd.f32 %v338, %v339
    %v341 = vrot.slane %v340, 1
    %v342 = vadd.f32 %v340, %v341
    %v343 = vrot.slane %v135, 4
    %v344 = vadd.f32 %v135, %v343
    %v345 = vrot.slane %v344, 2
    %v346 = vadd.f32 %v344, %v345
    %v347 = vrot.slane %v346, 1
    %v348 = vadd.f32 %v346, %v347
    %v349 = vrot.slane %v136, 4
    %v350 = vadd.f32 %v136, %v349
    %v351 = vrot.slane %v350, 2
    %v352 = vadd.f32 %v350, %v351
    %v353 = vrot.slane %v352, 1
    %v354 = vadd.f32 %v352, %v353
    %v355 = vrot.slane %v137, 4
    %v356 = vadd.f32 %v137, %v355
    %v357 = vrot.slane %v356, 2
    %v358 = vadd.f32 %v356, %v357
    %v359 = vrot.slane %v358, 1
    %v360 = vadd.f32 %v358, %v359
    %v361 = vrot.slane %v138, 4
    %v362 = vadd.f32 %v138, %v361
    %v363 = vrot.slane %v362, 2
    %v364 = vadd.f32 %v362, %v363
    %v365 = vrot.slane %v364, 1
    %v366 = vadd.f32 %v364, %v365
    %v367 = vrot.slane %v139, 4
    %v368 = vadd.f32 %v139, %v367
    %v369 = vrot.slane %v368, 2
    %v370 = vadd.f32 %v368, %v369
    %v371 = vrot.slane %v370, 1
    %v372 = vadd.f32 %v370, %v371
    %v373 = vrot.slane %v140, 4
    %v374 = vadd.f32 %v140, %v373
    %v375 = vrot.slane %v374, 2
    %v376 = vadd.f32 %v374, %v375
    %v377 = vrot.slane %v376, 1
    %v378 = vadd.f32 %v376, %v377
    %v379 = vrot.slane %v141, 4
    %v380 = vadd.f32 %v141, %v379
    %v381 = vrot.slane %v380, 2
    %v382 = vadd.f32 %v380, %v381
    %v383 = vrot.slane %v382, 1
    %v384 = vadd.f32 %v382, %v383
    %v385 = vrot.slane %v142, 4
    %v386 = vadd.f32 %v142, %v385
    %v387 = vrot.slane %v386, 2
    %v388 = vadd.f32 %v386, %v387
    %v389 = vrot.slane %v388, 1
    %v390 = vadd.f32 %v388, %v389
    %v391 = vrot.slane %v143, 4
    %v392 = vadd.f32 %v143, %v391
    %v393 = vrot.slane %v392, 2
    %v394 = vadd.f32 %v392, %v393
    %v395 = vrot.slane %v394, 1
    %v396 = vadd.f32 %v394, %v395
    %v397 = vrot.slane %v144, 4
    %v398 = vadd.f32 %v144, %v397
    %v399 = vrot.slane %v398, 2
    %v400 = vadd.f32 %v398, %v399
    %v401 = vrot.slane %v400, 1
    %v402 = vadd.f32 %v400, %v401
    %v403 = vrot.slane %v145, 4
    %v404 = vadd.f32 %v145, %v403
    %v405 = vrot.slane %v404, 2
    %v406 = vadd.f32 %v404, %v405
    %v407 = vrot.slane %v406, 1
    %v408 = vadd.f32 %v406, %v407
    %v409 = vrot.slane %v146, 4
    %v410 = vadd.f32 %v146, %v409
    %v411 = vrot.slane %v410, 2
    %v412 = vadd.f32 %v410, %v411
    %v413 = vrot.slane %v412, 1
    %v414 = vadd.f32 %v412, %v413
    %v415 = vrot.slane %v147, 4
    %v416 = vadd.f32 %v147, %v415
    %v417 = vrot.slane %v416, 2
    %v418 = vadd.f32 %v416, %v417
    %v419 = vrot.slane %v418, 1
    %v420 = vadd.f32 %v418, %v419
    %v421 = vrot.slane %v148, 4
    %v422 = vadd.f32 %v148, %v421
    %v423 = vrot.slane %v422, 2
    %v424 = vadd.f32 %v422, %v423
    %v425 = vrot.slane %v424, 1
    %v426 = vadd.f32 %v424, %v425
    %v427 = vrot.slane %v149, 4
    %v428 = vadd.f32 %v149, %v427
    %v429 = vrot.slane %v428, 2
    %v430 = vadd.f32 %v428, %v429
    %v431 = vrot.slane %v430, 1
    %v432 = vadd.f32 %v430, %v431
    %v433 = vrot.slane %v150, 4
    %v434 = vadd.f32 %v150, %v433
    %v435 = vrot.slane %v434, 2
    %v436 = vadd.f32 %v434, %v435
    %v437 = vrot.slane %v436, 1
    %v438 = vadd.f32 %v436, %v437
    %vm487 = vcmask 1041409
    %v488 = vsel %vm487, %v192, %v156
    %vm489 = vcmask 1042434
    %v490 = vsel %vm489, %v228, %v488
    %vm491 = vcmask 1043459
    %v492 = vsel %vm491, %v264, %v490
    %vm493 = vcmask 1044484
    %v494 = vsel %vm493, %v300, %v492
    %vm495 = vcmask 1045509
    %v496 = vsel %vm495, %v336, %v494
    %vm497 = vcmask 1046534
    %v498 = vsel %vm497, %v372, %v496
    %vm499 = vcmask 1047559
    %v500 = vsel %vm499, %v408, %v498
    %v501 = vsel %vm487, %v198, %v162
    %v502 = vsel %vm489, %v234, %v501
    %v503 = vsel %vm491, %v270, %v502
    %v504 = vsel %vm493, %v306, %v503
    %v505 = vsel %vm495, %v342, %v504
    %v506 = vsel %vm497, %v378, %v505
    %v507 = vsel %vm499, %v414, %v506
    %v508 = vsel %vm487, %v204, %v168
    %v509 = vsel %vm489, %v240, %v508
    %v510 = vsel %vm491, %v276, %v509
    %v511 = vsel %vm493, %v312, %v510
    %v512 = vsel %vm495, %v348, %v511
    %v513 = vsel %vm497, %v384, %v512
    %v514 = vsel %vm499, %v420, %v513
    %v515 = vsel %vm487, %v210, %v174
    %v516 = vsel %vm489, %v246, %v515
    %v517 = vsel %vm491, %v282, %v516
    %v518 = vsel %vm493, %v318, %v517
    %v519 = vsel %vm495, %v354, %v518
    %v520 = vsel %vm497, %v390, %v519
    %v521 = vsel %vm499, %v426, %v520
    %v522 = vsel %vm487, %v216, %v180
    %v523 = vsel %vm489, %v252, %v522
    %v524 = vsel %vm491, %v288, %v523
    %v525 = vsel %vm493, %v324, %v524
    %v526 = vsel %vm495, %v360, %v525
    %v527 = vsel %vm497, %v396, %v526
    %v528 = vsel %vm499, %v432, %v527
    %v529 = vsel %vm487, %v222, %v186
    %v530 = vsel %vm489, %v258, %v529
    %v531 = vsel %vm491, %v294, %v530
    %v532 = vsel %vm493, %v330, %v531
    %v533 = vsel %vm495, %v366, %v532
    %v534 = vsel %vm497, %v402, %v533
    %v535 = vsel %vm499, %v438, %v534
    %v542 = vadd.f32 %v73, %v500
    %v543 = vadd.f32 %v74, %v507
    %v544 = vadd.f32 %v75, %v514
    %v545 = vadd.f32 %v76, %v521
    %v546 = vadd.f32 %v77, %v528
    %v547 = vadd.f32 %v78, %v535
    %548 = vst [vmem:[#allocation2] sm:$0xff] %v542
    %549 = vst [vmem:[#allocation2 + $0x8] sm:$0xff] %v543
    %550 = vst [vmem:[#allocation2 + $0x10] sm:$0xff] %v544
    %551 = vst [vmem:[#allocation2 + $0x18] sm:$0xff] %v545
    %552 = vst [vmem:[#allocation2 + $0x20] sm:$0xff] %v546
    %553 = vst [vmem:[#allocation2 + $0x28] sm:$0xff] %v547
    // Predicated region
    $region38: #{bert_classifier_forward.1} parent=1 // pred_check
      %p554 = pneg %p63
    $region39: #{bert_classifier_forward.1} parent=1 // pred_check_branch
      %556 = sbr.rel (%p554) target = $region41
    $region40: #{bert_classifier_forward.1} parent=1 // pred_region
      %v557 = vld [vmem:[#allocation2] sm:$0xff]
      %v558 = vld [vmem:[#allocation2 + $0x8] sm:$0xff]
      %v559 = vld [vmem:[#allocation2 + $0x10] sm:$0xff]
      %v560 = vld [vmem:[#allocation2 + $0x18] sm:$0xff]
      %v561 = vld [vmem:[#allocation2 + $0x20] sm:$0xff]
      %v562 = vld [vmem:[#allocation2 + $0x28] sm:$0xff]
      %v563 = vpack.c.bf16 %v557, %v557
      %v564 = vpack.c.bf16 %v558, %v558
      %v565 = vpack.c.bf16 %v559, %v559
      %v566 = vpack.c.bf16 %v560, %v560
      %v567 = vpack.c.bf16 %v561, %v561
      %v568 = vpack.c.bf16 %v562, %v562
      %v569 = vld [vmem:[#allocation3] sm:$0xff]
      %v570 = vld [vmem:[#allocation3 + $0x8] sm:$0xff]
      %v571 = vld [vmem:[#allocation3 + $0x10] sm:$0xff]
      %v572 = vld [vmem:[#allocation3 + $0x18] sm:$0xff]
      %v573 = vld [vmem:[#allocation3 + $0x20] sm:$0xff]
      %v574 = vld [vmem:[#allocation3 + $0x28] sm:$0xff]
      %v575 = vld [vmem:[#allocation3 + $0x30] sm:$0xff]
      %v576 = vld [vmem:[#allocation3 + $0x38] sm:$0xff]
      %v577 = vld [vmem:[#allocation3 + $0x40] sm:$0xff]
      %v578 = vld [vmem:[#allocation3 + $0x48] sm:$0xff]
      %v579 = vld [vmem:[#allocation3 + $0x50] sm:$0xff]
      %v580 = vld [vmem:[#allocation3 + $0x58] sm:$0xff]
      %v581 = vld [vmem:[#allocation3 + $0x60] sm:$0xff]
      %v582 = vld [vmem:[#allocation3 + $0x68] sm:$0xff]
      %v583 = vld [vmem:[#allocation3 + $0x70] sm:$0xff]
      %v584 = vld [vmem:[#allocation3 + $0x78] sm:$0xff]
      %v585 = vld [vmem:[#allocation3 + $0x80] sm:$0xff]
      %v586 = vld [vmem:[#allocation3 + $0x88] sm:$0xff]
      %v587 = vld [vmem:[#allocation3 + $0x90] sm:$0xff]
      %v588 = vld [vmem:[#allocation3 + $0x98] sm:$0xff]
      %v589 = vld [vmem:[#allocation3 + $0xa0] sm:$0xff]
      %v590 = vld [vmem:[#allocation3 + $0xa8] sm:$0xff]
      %v591 = vld [vmem:[#allocation3 + $0xb0] sm:$0xff]
      %v592 = vld [vmem:[#allocation3 + $0xb8] sm:$0xff]
      %v593 = vld [vmem:[#allocation3 + $0xc0] sm:$0xff]
      %v594 = vld [vmem:[#allocation3 + $0xc8] sm:$0xff]
      %v595 = vld [vmem:[#allocation3 + $0xd0] sm:$0xff]
      %v596 = vld [vmem:[#allocation3 + $0xd8] sm:$0xff]
      %v597 = vld [vmem:[#allocation3 + $0xe0] sm:$0xff]
      %v598 = vld [vmem:[#allocation3 + $0xe8] sm:$0xff]
      %v599 = vld [vmem:[#allocation3 + $0xf0] sm:$0xff]
      %v600 = vld [vmem:[#allocation3 + $0xf8] sm:$0xff]
      %v601 = vld [vmem:[#allocation3 + $0x100] sm:$0xff]
      %v602 = vld [vmem:[#allocation3 + $0x108] sm:$0xff]
      %v603 = vld [vmem:[#allocation3 + $0x110] sm:$0xff]
      %v604 = vld [vmem:[#allocation3 + $0x118] sm:$0xff]
      %v605 = vld [vmem:[#allocation3 + $0x120] sm:$0xff]
      %v606 = vld [vmem:[#allocation3 + $0x128] sm:$0xff]
      %v607 = vld [vmem:[#allocation3 + $0x130] sm:$0xff]
      %v608 = vld [vmem:[#allocation3 + $0x138] sm:$0xff]
      %v609 = vld [vmem:[#allocation3 + $0x140] sm:$0xff]
      %v610 = vld [vmem:[#allocation3 + $0x148] sm:$0xff]
      %v611 = vld [vmem:[#allocation3 + $0x150] sm:$0xff]
      %v612 = vld [vmem:[#allocation3 + $0x158] sm:$0xff]
      %v613 = vld [vmem:[#allocation3 + $0x160] sm:$0xff]
      %v614 = vld [vmem:[#allocation3 + $0x168] sm:$0xff]
      %v615 = vld [vmem:[#allocation3 + $0x170] sm:$0xff]
      %v616 = vld [vmem:[#allocation3 + $0x178] sm:$0xff]
      %v617 = vld [vmem:[#allocation3 + $0x180] sm:$0xff]
      %v618 = vld [vmem:[#allocation3 + $0x188] sm:$0xff]
      %v619 = vld [vmem:[#allocation3 + $0x190] sm:$0xff]
      %v620 = vld [vmem:[#allocation3 + $0x198] sm:$0xff]
      %v621 = vld [vmem:[#allocation3 + $0x1a0] sm:$0xff]
      %v622 = vld [vmem:[#allocation3 + $0x1a8] sm:$0xff]
      %v623 = vld [vmem:[#allocation3 + $0x1b0] sm:$0xff]
      %v624 = vld [vmem:[#allocation3 + $0x1b8] sm:$0xff]
      %v625 = vld [vmem:[#allocation3 + $0x1c0] sm:$0xff]
      %v626 = vld [vmem:[#allocation3 + $0x1c8] sm:$0xff]
      %v627 = vld [vmem:[#allocation3 + $0x1d0] sm:$0xff]
      %v628 = vld [vmem:[#allocation3 + $0x1d8] sm:$0xff]
      %v629 = vld [vmem:[#allocation3 + $0x1e0] sm:$0xff]
      %v630 = vld [vmem:[#allocation3 + $0x1e8] sm:$0xff]
      %v631 = vld [vmem:[#allocation3 + $0x1f0] sm:$0xff]
      %v632 = vld [vmem:[#allocation3 + $0x1f8] sm:$0xff]
      %v633 = vld [vmem:[#allocation3 + $0x200] sm:$0xff]
      %v634 = vld [vmem:[#allocation3 + $0x208] sm:$0xff]
      %v635 = vld [vmem:[#allocation3 + $0x210] sm:$0xff]
      %v636 = vld [vmem:[#allocation3 + $0x218] sm:$0xff]
      %v637 = vld [vmem:[#allocation3 + $0x220] sm:$0xff]
      %v638 = vld [vmem:[#allocation3 + $0x228] sm:$0xff]
      %v639 = vld [vmem:[#allocation3 + $0x230] sm:$0xff]
      %v640 = vld [vmem:[#allocation3 + $0x238] sm:$0xff]
      %v641 = vld [vmem:[#allocation3 + $0x240] sm:$0xff]
      %v642 = vld [vmem:[#allocation3 + $0x248] sm:$0xff]
      %v643 = vld [vmem:[#allocation3 + $0x250] sm:$0xff]
      %v644 = vld [vmem:[#allocation3 + $0x258] sm:$0xff]
      %v645 = vld [vmem:[#allocation3 + $0x260] sm:$0xff]
      %v646 = vld [vmem:[#allocation3 + $0x268] sm:$0xff]
      %v647 = vld [vmem:[#allocation3 + $0x270] sm:$0xff]
      %v648 = vld [vmem:[#allocation3 + $0x278] sm:$0xff]
      %v649 = vld [vmem:[#allocation3 + $0x280] sm:$0xff]
      %v650 = vld [vmem:[#allocation3 + $0x288] sm:$0xff]
      %v651 = vld [vmem:[#allocation3 + $0x290] sm:$0xff]
      %v652 = vld [vmem:[#allocation3 + $0x298] sm:$0xff]
      %v653 = vld [vmem:[#allocation3 + $0x2a0] sm:$0xff]
      %v654 = vld [vmem:[#allocation3 + $0x2a8] sm:$0xff]
      %v655 = vld [vmem:[#allocation3 + $0x2b0] sm:$0xff]
      %v656 = vld [vmem:[#allocation3 + $0x2b8] sm:$0xff]
      %v657 = vld [vmem:[#allocation3 + $0x2c0] sm:$0xff]
      %v658 = vld [vmem:[#allocation3 + $0x2c8] sm:$0xff]
      %v659 = vld [vmem:[#allocation3 + $0x2d0] sm:$0xff]
      %v660 = vld [vmem:[#allocation3 + $0x2d8] sm:$0xff]
      %v661 = vld [vmem:[#allocation3 + $0x2e0] sm:$0xff]
      %v662 = vld [vmem:[#allocation3 + $0x2e8] sm:$0xff]
      %v663 = vld [vmem:[#allocation3 + $0x2f0] sm:$0xff]
      %v664 = vld [vmem:[#allocation3 + $0x2f8] sm:$0xff]
      %v665 = vld [vmem:[#allocation3 + $0x300] sm:$0xff]
      %v666 = vld [vmem:[#allocation3 + $0x308] sm:$0xff]
      %v667 = vld [vmem:[#allocation3 + $0x310] sm:$0xff]
      %v668 = vld [vmem:[#allocation3 + $0x318] sm:$0xff]
      %v669 = vld [vmem:[#allocation3 + $0x320] sm:$0xff]
      %v670 = vld [vmem:[#allocation3 + $0x328] sm:$0xff]
      %v671 = vld [vmem:[#allocation3 + $0x330] sm:$0xff]
      %v672 = vld [vmem:[#allocation3 + $0x338] sm:$0xff]
      %v673 = vld [vmem:[#allocation3 + $0x340] sm:$0xff]
      %v674 = vld [vmem:[#allocation3 + $0x348] sm:$0xff]
      %v675 = vld [vmem:[#allocation3 + $0x350] sm:$0xff]
      %v676 = vld [vmem:[#allocation3 + $0x358] sm:$0xff]
      %v677 = vld [vmem:[#allocation3 + $0x360] sm:$0xff]
      %v678 = vld [vmem:[#allocation3 + $0x368] sm:$0xff]
      %v679 = vld [vmem:[#allocation3 + $0x370] sm:$0xff]
      %v680 = vld [vmem:[#allocation3 + $0x378] sm:$0xff]
      %v681 = vld [vmem:[#allocation3 + $0x380] sm:$0xff]
      %v682 = vld [vmem:[#allocation3 + $0x388] sm:$0xff]
      %v683 = vld [vmem:[#allocation3 + $0x390] sm:$0xff]
      %v684 = vld [vmem:[#allocation3 + $0x398] sm:$0xff]
      %v685 = vld [vmem:[#allocation3 + $0x3a0] sm:$0xff]
      %v686 = vld [vmem:[#allocation3 + $0x3a8] sm:$0xff]
      %v687 = vld [vmem:[#allocation3 + $0x3b0] sm:$0xff]
      %v688 = vld [vmem:[#allocation3 + $0x3b8] sm:$0xff]
      %v689 = vld [vmem:[#allocation3 + $0x3c0] sm:$0xff]
      %v690 = vld [vmem:[#allocation3 + $0x3c8] sm:$0xff]
      %v691 = vld [vmem:[#allocation3 + $0x3d0] sm:$0xff]
      %v692 = vld [vmem:[#allocation3 + $0x3d8] sm:$0xff]
      %v693 = vld [vmem:[#allocation3 + $0x3e0] sm:$0xff]
      %v694 = vld [vmem:[#allocation3 + $0x3e8] sm:$0xff]
      %v695 = vld [vmem:[#allocation3 + $0x3f0] sm:$0xff]
      %v696 = vld [vmem:[#allocation3 + $0x3f8] sm:$0xff]
      %v697 = vld [vmem:[#allocation3 + $0x400] sm:$0xff]
      %v698 = vld [vmem:[#allocation3 + $0x408] sm:$0xff]
      %v699 = vld [vmem:[#allocation3 + $0x410] sm:$0xff]
      %v700 = vld [vmem:[#allocation3 + $0x418] sm:$0xff]
      %v701 = vld [vmem:[#allocation3 + $0x420] sm:$0xff]
      %v702 = vld [vmem:[#allocation3 + $0x428] sm:$0xff]
      %v703 = vld [vmem:[#allocation3 + $0x430] sm:$0xff]
      %v704 = vld [vmem:[#allocation3 + $0x438] sm:$0xff]
      %v705 = vld [vmem:[#allocation3 + $0x440] sm:$0xff]
      %v706 = vld [vmem:[#allocation3 + $0x448] sm:$0xff]
      %v707 = vld [vmem:[#allocation3 + $0x450] sm:$0xff]
      %v708 = vld [vmem:[#allocation3 + $0x458] sm:$0xff]
      %v709 = vld [vmem:[#allocation3 + $0x460] sm:$0xff]
      %v710 = vld [vmem:[#allocation3 + $0x468] sm:$0xff]
      %v711 = vld [vmem:[#allocation3 + $0x470] sm:$0xff]
      %v712 = vld [vmem:[#allocation3 + $0x478] sm:$0xff]
      %v713 = vld [vmem:[#allocation3 + $0x480] sm:$0xff]
      %v714 = vld [vmem:[#allocation3 + $0x488] sm:$0xff]
      %v715 = vld [vmem:[#allocation3 + $0x490] sm:$0xff]
      %v716 = vld [vmem:[#allocation3 + $0x498] sm:$0xff]
      %v717 = vld [vmem:[#allocation3 + $0x4a0] sm:$0xff]
      %v718 = vld [vmem:[#allocation3 + $0x4a8] sm:$0xff]
      %v719 = vld [vmem:[#allocation3 + $0x4b0] sm:$0xff]
      %v720 = vld [vmem:[#allocation3 + $0x4b8] sm:$0xff]
      %v721 = vld [vmem:[#allocation3 + $0x4c0] sm:$0xff]
      %v722 = vld [vmem:[#allocation3 + $0x4c8] sm:$0xff]
      %v723 = vld [vmem:[#allocation3 + $0x4d0] sm:$0xff]
      %v724 = vld [vmem:[#allocation3 + $0x4d8] sm:$0xff]
      %v725 = vld [vmem:[#allocation3 + $0x4e0] sm:$0xff]
      %v726 = vld [vmem:[#allocation3 + $0x4e8] sm:$0xff]
      %v727 = vld [vmem:[#allocation3 + $0x4f0] sm:$0xff]
      %v728 = vld [vmem:[#allocation3 + $0x4f8] sm:$0xff]
      %v729 = vld [vmem:[#allocation3 + $0x500] sm:$0xff]
      %v730 = vld [vmem:[#allocation3 + $0x508] sm:$0xff]
      %v731 = vld [vmem:[#allocation3 + $0x510] sm:$0xff]
      %v732 = vld [vmem:[#allocation3 + $0x518] sm:$0xff]
      %v733 = vld [vmem:[#allocation3 + $0x520] sm:$0xff]
      %v734 = vld [vmem:[#allocation3 + $0x528] sm:$0xff]
      %v735 = vld [vmem:[#allocation3 + $0x530] sm:$0xff]
      %v736 = vld [vmem:[#allocation3 + $0x538] sm:$0xff]
      %v737 = vld [vmem:[#allocation3 + $0x540] sm:$0xff]
      %v738 = vld [vmem:[#allocation3 + $0x548] sm:$0xff]
      %v739 = vld [vmem:[#allocation3 + $0x550] sm:$0xff]
      %v740 = vld [vmem:[#allocation3 + $0x558] sm:$0xff]
      %v741 = vld [vmem:[#allocation3 + $0x560] sm:$0xff]
      %v742 = vld [vmem:[#allocation3 + $0x568] sm:$0xff]
      %v743 = vld [vmem:[#allocation3 + $0x570] sm:$0xff]
      %v744 = vld [vmem:[#allocation3 + $0x578] sm:$0xff]
      %v745 = vld [vmem:[#allocation3 + $0x580] sm:$0xff]
      %v746 = vld [vmem:[#allocation3 + $0x588] sm:$0xff]
      %v747 = vld [vmem:[#allocation3 + $0x590] sm:$0xff]
      %v748 = vld [vmem:[#allocation3 + $0x598] sm:$0xff]
      %v749 = vld [vmem:[#allocation3 + $0x5a0] sm:$0xff]
      %v750 = vld [vmem:[#allocation3 + $0x5a8] sm:$0xff]
      %v751 = vld [vmem:[#allocation3 + $0x5b0] sm:$0xff]
      %v752 = vld [vmem:[#allocation3 + $0x5b8] sm:$0xff]
      %v753 = vld [vmem:[#allocation3 + $0x5c0] sm:$0xff]
      %v754 = vld [vmem:[#allocation3 + $0x5c8] sm:$0xff]
      %v755 = vld [vmem:[#allocation3 + $0x5d0] sm:$0xff]
      %v756 = vld [vmem:[#allocation3 + $0x5d8] sm:$0xff]
      %v757 = vld [vmem:[#allocation3 + $0x5e0] sm:$0xff]
      %v758 = vld [vmem:[#allocation3 + $0x5e8] sm:$0xff]
      %v759 = vld [vmem:[#allocation3 + $0x5f0] sm:$0xff]
      %v760 = vld [vmem:[#allocation3 + $0x5f8] sm:$0xff]
      %v761 = vld [vmem:[#allocation3 + $0x600] sm:$0xff]
      %v762 = vld [vmem:[#allocation3 + $0x608] sm:$0xff]
      %v763 = vld [vmem:[#allocation3 + $0x610] sm:$0xff]
      %v764 = vld [vmem:[#allocation3 + $0x618] sm:$0xff]
      %v765 = vld [vmem:[#allocation3 + $0x620] sm:$0xff]
      %v766 = vld [vmem:[#allocation3 + $0x628] sm:$0xff]
      %v767 = vld [vmem:[#allocation3 + $0x630] sm:$0xff]
      %v768 = vld [vmem:[#allocation3 + $0x638] sm:$0xff]
      %v769 = vld [vmem:[#allocation3 + $0x640] sm:$0xff]
      %v770 = vld [vmem:[#allocation3 + $0x648] sm:$0xff]
      %v771 = vld [vmem:[#allocation3 + $0x650] sm:$0xff]
      %v772 = vld [vmem:[#allocation3 + $0x658] sm:$0xff]
      %v773 = vld [vmem:[#allocation3 + $0x660] sm:$0xff]
      %v774 = vld [vmem:[#allocation3 + $0x668] sm:$0xff]
      %v775 = vld [vmem:[#allocation3 + $0x670] sm:$0xff]
      %v776 = vld [vmem:[#allocation3 + $0x678] sm:$0xff]
      %v777 = vld [vmem:[#allocation3 + $0x680] sm:$0xff]
      %v778 = vld [vmem:[#allocation3 + $0x688] sm:$0xff]
      %v779 = vld [vmem:[#allocation3 + $0x690] sm:$0xff]
      %v780 = vld [vmem:[#allocation3 + $0x698] sm:$0xff]
      %v781 = vld [vmem:[#allocation3 + $0x6a0] sm:$0xff]
      %v782 = vld [vmem:[#allocation3 + $0x6a8] sm:$0xff]
      %v783 = vld [vmem:[#allocation3 + $0x6b0] sm:$0xff]
      %v784 = vld [vmem:[#allocation3 + $0x6b8] sm:$0xff]
      %v785 = vld [vmem:[#allocation3 + $0x6c0] sm:$0xff]
      %v786 = vld [vmem:[#allocation3 + $0x6c8] sm:$0xff]
      %v787 = vld [vmem:[#allocation3 + $0x6d0] sm:$0xff]
      %v788 = vld [vmem:[#allocation3 + $0x6d8] sm:$0xff]
      %v789 = vld [vmem:[#allocation3 + $0x6e0] sm:$0xff]
      %v790 = vld [vmem:[#allocation3 + $0x6e8] sm:$0xff]
      %v791 = vld [vmem:[#allocation3 + $0x6f0] sm:$0xff]
      %v792 = vld [vmem:[#allocation3 + $0x6f8] sm:$0xff]
      %v793 = vld [vmem:[#allocation3 + $0x700] sm:$0xff]
      %v794 = vld [vmem:[#allocation3 + $0x708] sm:$0xff]
      %v795 = vld [vmem:[#allocation3 + $0x710] sm:$0xff]
      %v796 = vld [vmem:[#allocation3 + $0x718] sm:$0xff]
      %v797 = vld [vmem:[#allocation3 + $0x720] sm:$0xff]
      %v798 = vld [vmem:[#allocation3 + $0x728] sm:$0xff]
      %v799 = vld [vmem:[#allocation3 + $0x730] sm:$0xff]
      %v800 = vld [vmem:[#allocation3 + $0x738] sm:$0xff]
      %v801 = vld [vmem:[#allocation3 + $0x740] sm:$0xff]
      %v802 = vld [vmem:[#allocation3 + $0x748] sm:$0xff]
      %v803 = vld [vmem:[#allocation3 + $0x750] sm:$0xff]
      %v804 = vld [vmem:[#allocation3 + $0x758] sm:$0xff]
      %v805 = vld [vmem:[#allocation3 + $0x760] sm:$0xff]
      %v806 = vld [vmem:[#allocation3 + $0x768] sm:$0xff]
      %v807 = vld [vmem:[#allocation3 + $0x770] sm:$0xff]
      %v808 = vld [vmem:[#allocation3 + $0x778] sm:$0xff]
      %v809 = vld [vmem:[#allocation3 + $0x780] sm:$0xff]
      %v810 = vld [vmem:[#allocation3 + $0x788] sm:$0xff]
      %v811 = vld [vmem:[#allocation3 + $0x790] sm:$0xff]
      %v812 = vld [vmem:[#allocation3 + $0x798] sm:$0xff]
      %v813 = vld [vmem:[#allocation3 + $0x7a0] sm:$0xff]
      %v814 = vld [vmem:[#allocation3 + $0x7a8] sm:$0xff]
      %v815 = vld [vmem:[#allocation3 + $0x7b0] sm:$0xff]
      %v816 = vld [vmem:[#allocation3 + $0x7b8] sm:$0xff]
      %v817 = vld [vmem:[#allocation3 + $0x7c0] sm:$0xff]
      %v818 = vld [vmem:[#allocation3 + $0x7c8] sm:$0xff]
      %v819 = vld [vmem:[#allocation3 + $0x7d0] sm:$0xff]
      %v820 = vld [vmem:[#allocation3 + $0x7d8] sm:$0xff]
      %v821 = vld [vmem:[#allocation3 + $0x7e0] sm:$0xff]
      %v822 = vld [vmem:[#allocation3 + $0x7e8] sm:$0xff]
      %v823 = vld [vmem:[#allocation3 + $0x7f0] sm:$0xff]
      %v824 = vld [vmem:[#allocation3 + $0x7f8] sm:$0xff]
      %v825 = vld [vmem:[#allocation3 + $0x800] sm:$0xff]
      %v826 = vld [vmem:[#allocation3 + $0x808] sm:$0xff]
      %v827 = vld [vmem:[#allocation3 + $0x810] sm:$0xff]
      %v828 = vld [vmem:[#allocation3 + $0x818] sm:$0xff]
      %v829 = vld [vmem:[#allocation3 + $0x820] sm:$0xff]
      %v830 = vld [vmem:[#allocation3 + $0x828] sm:$0xff]
      %v831 = vld [vmem:[#allocation3 + $0x830] sm:$0xff]
      %v832 = vld [vmem:[#allocation3 + $0x838] sm:$0xff]
      %v833 = vld [vmem:[#allocation3 + $0x840] sm:$0xff]
      %v834 = vld [vmem:[#allocation3 + $0x848] sm:$0xff]
      %v835 = vld [vmem:[#allocation3 + $0x850] sm:$0xff]
      %v836 = vld [vmem:[#allocation3 + $0x858] sm:$0xff]
      %v837 = vld [vmem:[#allocation3 + $0x860] sm:$0xff]
      %v838 = vld [vmem:[#allocation3 + $0x868] sm:$0xff]
      %v839 = vld [vmem:[#allocation3 + $0x870] sm:$0xff]
      %v840 = vld [vmem:[#allocation3 + $0x878] sm:$0xff]
      %v841 = vld [vmem:[#allocation3 + $0x880] sm:$0xff]
      %v842 = vld [vmem:[#allocation3 + $0x888] sm:$0xff]
      %v843 = vld [vmem:[#allocation3 + $0x890] sm:$0xff]
      %v844 = vld [vmem:[#allocation3 + $0x898] sm:$0xff]
      %v845 = vld [vmem:[#allocation3 + $0x8a0] sm:$0xff]
      %v846 = vld [vmem:[#allocation3 + $0x8a8] sm:$0xff]
      %v847 = vld [vmem:[#allocation3 + $0x8b0] sm:$0xff]
      %v848 = vld [vmem:[#allocation3 + $0x8b8] sm:$0xff]
      %v849 = vld [vmem:[#allocation3 + $0x8c0] sm:$0xff]
      %v850 = vld [vmem:[#allocation3 + $0x8c8] sm:$0xff]
      %v851 = vld [vmem:[#allocation3 + $0x8d0] sm:$0xff]
      %v852 = vld [vmem:[#allocation3 + $0x8d8] sm:$0xff]
      %v853 = vld [vmem:[#allocation3 + $0x8e0] sm:$0xff]
      %v854 = vld [vmem:[#allocation3 + $0x8e8] sm:$0xff]
      %v855 = vld [vmem:[#allocation3 + $0x8f0] sm:$0xff]
      %v856 = vld [vmem:[#allocation3 + $0x8f8] sm:$0xff]
      %v857 = vld [vmem:[#allocation5] sm:$0x3f]
      %v859 = vperm.slane %v857, 0
      %v860 = vperm.slane %v857, 1
      %v861 = vperm.slane %v857, 2
      %v862 = vperm.slane %v857, 3
      %v863 = vperm.slane %v857, 4
      %v864 = vperm.slane %v857, 5
      %v1159 = vunpack.c.l.b16 %v569
      %v1160 = vunpack.c.h.b16 %v569
      %v1161 = vunpack.c.l.b16 %v570
      %v1162 = vunpack.c.h.b16 %v570
      %v1163 = vunpack.c.l.b16 %v571
      %v1164 = vunpack.c.h.b16 %v571
      %v1165 = vunpack.c.l.b16 %v572
      %v1166 = vunpack.c.h.b16 %v572
      %v1167 = vunpack.c.l.b16 %v573
      %v1168 = vunpack.c.h.b16 %v573
      %v1169 = vunpack.c.l.b16 %v574
      %v1170 = vunpack.c.h.b16 %v574
      %v1171 = vunpack.c.l.b16 %v575
      %v1172 = vunpack.c.h.b16 %v575
      %v1173 = vunpack.c.l.b16 %v576
      %v1174 = vunpack.c.h.b16 %v576
      %v1175 = vunpack.c.l.b16 %v577
      %v1176 = vunpack.c.h.b16 %v577
      %v1177 = vunpack.c.l.b16 %v578
      %v1178 = vunpack.c.h.b16 %v578
      %v1179 = vunpack.c.l.b16 %v579
      %v1180 = vunpack.c.h.b16 %v579
      %v1181 = vunpack.c.l.b16 %v580
      %v1182 = vunpack.c.h.b16 %v580
      %v1183 = vunpack.c.l.b16 %v581
      %v1184 = vunpack.c.h.b16 %v581
      %v1185 = vunpack.c.l.b16 %v582
      %v1186 = vunpack.c.h.b16 %v582
      %v1187 = vunpack.c.l.b16 %v583
      %v1188 = vunpack.c.h.b16 %v583
      %v1189 = vunpack.c.l.b16 %v584
      %v1190 = vunpack.c.h.b16 %v584
      %v1191 = vunpack.c.l.b16 %v585
      %v1192 = vunpack.c.h.b16 %v585
      %v1193 = vunpack.c.l.b16 %v586
      %v1194 = vunpack.c.h.b16 %v586
      %v1195 = vunpack.c.l.b16 %v587
      %v1196 = vunpack.c.h.b16 %v587
      %v1197 = vunpack.c.l.b16 %v588
      %v1198 = vunpack.c.h.b16 %v588
      %v1199 = vunpack.c.l.b16 %v589
      %v1200 = vunpack.c.h.b16 %v589
      %v1201 = vunpack.c.l.b16 %v590
      %v1202 = vunpack.c.h.b16 %v590
      %v1203 = vunpack.c.l.b16 %v591
      %v1204 = vunpack.c.h.b16 %v591
      %v1205 = vunpack.c.l.b16 %v592
      %v1206 = vunpack.c.h.b16 %v592
      %v1207 = vunpack.c.l.b16 %v593
      %v1208 = vunpack.c.h.b16 %v593
      %v1209 = vunpack.c.l.b16 %v594
      %v1210 = vunpack.c.h.b16 %v594
      %v1211 = vunpack.c.l.b16 %v595
      %v1212 = vunpack.c.h.b16 %v595
      %v1213 = vunpack.c.l.b16 %v596
      %v1214 = vunpack.c.h.b16 %v596
      %v1215 = vunpack.c.l.b16 %v597
      %v1216 = vunpack.c.h.b16 %v597
      %v1217 = vunpack.c.l.b16 %v598
      %v1218 = vunpack.c.h.b16 %v598
      %v1219 = vunpack.c.l.b16 %v599
      %v1220 = vunpack.c.h.b16 %v599
      %v1221 = vunpack.c.l.b16 %v600
      %v1222 = vunpack.c.h.b16 %v600
      %v1223 = vunpack.c.l.b16 %v601
      %v1224 = vunpack.c.h.b16 %v601
      %v1225 = vunpack.c.l.b16 %v602
      %v1226 = vunpack.c.h.b16 %v602
      %v1227 = vunpack.c.l.b16 %v603
      %v1228 = vunpack.c.h.b16 %v603
      %v1229 = vunpack.c.l.b16 %v604
      %v1230 = vunpack.c.h.b16 %v604
      %v1231 = vunpack.c.l.b16 %v605
      %v1232 = vunpack.c.h.b16 %v605
      %v1233 = vunpack.c.l.b16 %v606
      %v1234 = vunpack.c.h.b16 %v606
      %v1235 = vunpack.c.l.b16 %v607
      %v1236 = vunpack.c.h.b16 %v607
      %v1237 = vunpack.c.l.b16 %v608
      %v1238 = vunpack.c.h.b16 %v608
      %v1239 = vunpack.c.l.b16 %v609
      %v1240 = vunpack.c.h.b16 %v609
      %v1241 = vunpack.c.l.b16 %v610
      %v1242 = vunpack.c.h.b16 %v610
      %v1243 = vunpack.c.l.b16 %v611
      %v1244 = vunpack.c.h.b16 %v611
      %v1245 = vunpack.c.l.b16 %v612
      %v1246 = vunpack.c.h.b16 %v612
      %v1247 = vunpack.c.l.b16 %v613
      %v1248 = vunpack.c.h.b16 %v613
      %v1249 = vunpack.c.l.b16 %v614
      %v1250 = vunpack.c.h.b16 %v614
      %v1251 = vunpack.c.l.b16 %v615
      %v1252 = vunpack.c.h.b16 %v615
      %v1253 = vunpack.c.l.b16 %v616
      %v1254 = vunpack.c.h.b16 %v616
      %v1255 = vunpack.c.l.b16 %v617
      %v1256 = vunpack.c.h.b16 %v617
      %v1257 = vunpack.c.l.b16 %v618
      %v1258 = vunpack.c.h.b16 %v618
      %v1259 = vunpack.c.l.b16 %v619
      %v1260 = vunpack.c.h.b16 %v619
      %v1261 = vunpack.c.l.b16 %v620
      %v1262 = vunpack.c.h.b16 %v620
      %v1263 = vunpack.c.l.b16 %v621
      %v1264 = vunpack.c.h.b16 %v621
      %v1265 = vunpack.c.l.b16 %v622
      %v1266 = vunpack.c.h.b16 %v622
      %v1267 = vunpack.c.l.b16 %v623
      %v1268 = vunpack.c.h.b16 %v623
      %v1269 = vunpack.c.l.b16 %v624
      %v1270 = vunpack.c.h.b16 %v624
      %v1271 = vunpack.c.l.b16 %v625
      %v1272 = vunpack.c.h.b16 %v625
      %v1273 = vunpack.c.l.b16 %v626
      %v1274 = vunpack.c.h.b16 %v626
      %v1275 = vunpack.c.l.b16 %v627
      %v1276 = vunpack.c.h.b16 %v627
      %v1277 = vunpack.c.l.b16 %v628
      %v1278 = vunpack.c.h.b16 %v628
      %v1279 = vunpack.c.l.b16 %v629
      %v1280 = vunpack.c.h.b16 %v629
      %v1281 = vunpack.c.l.b16 %v630
      %v1282 = vunpack.c.h.b16 %v630
      %v1283 = vunpack.c.l.b16 %v631
      %v1284 = vunpack.c.h.b16 %v631
      %v1285 = vunpack.c.l.b16 %v632
      %v1286 = vunpack.c.h.b16 %v632
      %v1287 = vunpack.c.l.b16 %v633
      %v1288 = vunpack.c.h.b16 %v633
      %v1289 = vunpack.c.l.b16 %v634
      %v1290 = vunpack.c.h.b16 %v634
      %v1291 = vunpack.c.l.b16 %v635
      %v1292 = vunpack.c.h.b16 %v635
      %v1293 = vunpack.c.l.b16 %v636
      %v1294 = vunpack.c.h.b16 %v636
      %v1295 = vunpack.c.l.b16 %v637
      %v1296 = vunpack.c.h.b16 %v637
      %v1297 = vunpack.c.l.b16 %v638
      %v1298 = vunpack.c.h.b16 %v638
      %v1299 = vunpack.c.l.b16 %v639
      %v1300 = vunpack.c.h.b16 %v639
      %v1301 = vunpack.c.l.b16 %v640
      %v1302 = vunpack.c.h.b16 %v640
      %v1303 = vunpack.c.l.b16 %v641
      %v1304 = vunpack.c.h.b16 %v641
      %v1305 = vunpack.c.l.b16 %v642
      %v1306 = vunpack.c.h.b16 %v642
      %v1307 = vunpack.c.l.b16 %v643
      %v1308 = vunpack.c.h.b16 %v643
      %v1309 = vunpack.c.l.b16 %v644
      %v1310 = vunpack.c.h.b16 %v644
      %v1311 = vunpack.c.l.b16 %v645
      %v1312 = vunpack.c.h.b16 %v645
      %v1313 = vunpack.c.l.b16 %v646
      %v1314 = vunpack.c.h.b16 %v646
      %v1315 = vunpack.c.l.b16 %v647
      %v1316 = vunpack.c.h.b16 %v647
      %v1317 = vunpack.c.l.b16 %v648
      %v1318 = vunpack.c.h.b16 %v648
      %v1319 = vunpack.c.l.b16 %v649
      %v1320 = vunpack.c.h.b16 %v649
      %v1321 = vunpack.c.l.b16 %v650
      %v1322 = vunpack.c.h.b16 %v650
      %v1323 = vunpack.c.l.b16 %v651
      %v1324 = vunpack.c.h.b16 %v651
      %v1325 = vunpack.c.l.b16 %v652
      %v1326 = vunpack.c.h.b16 %v652
      %v1327 = vunpack.c.l.b16 %v653
      %v1328 = vunpack.c.h.b16 %v653
      %v1329 = vunpack.c.l.b16 %v654
      %v1330 = vunpack.c.h.b16 %v654
      %v1331 = vunpack.c.l.b16 %v655
      %v1332 = vunpack.c.h.b16 %v655
      %v1333 = vunpack.c.l.b16 %v656
      %v1334 = vunpack.c.h.b16 %v656
      %v1335 = vunpack.c.l.b16 %v657
      %v1336 = vunpack.c.h.b16 %v657
      %v1337 = vunpack.c.l.b16 %v658
      %v1338 = vunpack.c.h.b16 %v658
      %v1339 = vunpack.c.l.b16 %v659
      %v1340 = vunpack.c.h.b16 %v659
      %v1341 = vunpack.c.l.b16 %v660
      %v1342 = vunpack.c.h.b16 %v660
      %v1343 = vunpack.c.l.b16 %v661
      %v1344 = vunpack.c.h.b16 %v661
      %v1345 = vunpack.c.l.b16 %v662
      %v1346 = vunpack.c.h.b16 %v662
      %v1347 = vunpack.c.l.b16 %v663
      %v1348 = vunpack.c.h.b16 %v663
      %v1349 = vunpack.c.l.b16 %v664
      %v1350 = vunpack.c.h.b16 %v664
      %v1351 = vunpack.c.l.b16 %v665
      %v1352 = vunpack.c.h.b16 %v665
      %v1353 = vunpack.c.l.b16 %v666
      %v1354 = vunpack.c.h.b16 %v666
      %v1355 = vunpack.c.l.b16 %v667
      %v1356 = vunpack.c.h.b16 %v667
      %v1357 = vunpack.c.l.b16 %v668
      %v1358 = vunpack.c.h.b16 %v668
      %v1359 = vunpack.c.l.b16 %v669
      %v1360 = vunpack.c.h.b16 %v669
      %v1361 = vunpack.c.l.b16 %v670
      %v1362 = vunpack.c.h.b16 %v670
      %v1363 = vunpack.c.l.b16 %v671
      %v1364 = vunpack.c.h.b16 %v671
      %v1365 = vunpack.c.l.b16 %v672
      %v1366 = vunpack.c.h.b16 %v672
      %v1367 = vunpack.c.l.b16 %v673
      %v1368 = vunpack.c.h.b16 %v673
      %v1369 = vunpack.c.l.b16 %v674
      %v1370 = vunpack.c.h.b16 %v674
      %v1371 = vunpack.c.l.b16 %v675
      %v1372 = vunpack.c.h.b16 %v675
      %v1373 = vunpack.c.l.b16 %v676
      %v1374 = vunpack.c.h.b16 %v676
      %v1375 = vunpack.c.l.b16 %v677
      %v1376 = vunpack.c.h.b16 %v677
      %v1377 = vunpack.c.l.b16 %v678
      %v1378 = vunpack.c.h.b16 %v678
      %v1379 = vunpack.c.l.b16 %v679
      %v1380 = vunpack.c.h.b16 %v679
      %v1381 = vunpack.c.l.b16 %v680
      %v1382 = vunpack.c.h.b16 %v680
      %v1383 = vunpack.c.l.b16 %v681
      %v1384 = vunpack.c.h.b16 %v681
      %v1385 = vunpack.c.l.b16 %v682
      %v1386 = vunpack.c.h.b16 %v682
      %v1387 = vunpack.c.l.b16 %v683
      %v1388 = vunpack.c.h.b16 %v683
      %v1389 = vunpack.c.l.b16 %v684
      %v1390 = vunpack.c.h.b16 %v684
      %v1391 = vunpack.c.l.b16 %v685
      %v1392 = vunpack.c.h.b16 %v685
      %v1393 = vunpack.c.l.b16 %v686
      %v1394 = vunpack.c.h.b16 %v686
      %v1395 = vunpack.c.l.b16 %v687
      %v1396 = vunpack.c.h.b16 %v687
      %v1397 = vunpack.c.l.b16 %v688
      %v1398 = vunpack.c.h.b16 %v688
      %v1399 = vunpack.c.l.b16 %v689
      %v1400 = vunpack.c.h.b16 %v689
      %v1401 = vunpack.c.l.b16 %v690
      %v1402 = vunpack.c.h.b16 %v690
      %v1403 = vunpack.c.l.b16 %v691
      %v1404 = vunpack.c.h.b16 %v691
      %v1405 = vunpack.c.l.b16 %v692
      %v1406 = vunpack.c.h.b16 %v692
      %v1407 = vunpack.c.l.b16 %v693
      %v1408 = vunpack.c.h.b16 %v693
      %v1409 = vunpack.c.l.b16 %v694
      %v1410 = vunpack.c.h.b16 %v694
      %v1411 = vunpack.c.l.b16 %v695
      %v1412 = vunpack.c.h.b16 %v695
      %v1413 = vunpack.c.l.b16 %v696
      %v1414 = vunpack.c.h.b16 %v696
      %v1415 = vunpack.c.l.b16 %v697
      %v1416 = vunpack.c.h.b16 %v697
      %v1417 = vunpack.c.l.b16 %v698
      %v1418 = vunpack.c.h.b16 %v698
      %v1419 = vunpack.c.l.b16 %v699
      %v1420 = vunpack.c.h.b16 %v699
      %v1421 = vunpack.c.l.b16 %v700
      %v1422 = vunpack.c.h.b16 %v700
      %v1423 = vunpack.c.l.b16 %v701
      %v1424 = vunpack.c.h.b16 %v701
      %v1425 = vunpack.c.l.b16 %v702
      %v1426 = vunpack.c.h.b16 %v702
      %v1427 = vunpack.c.l.b16 %v703
      %v1428 = vunpack.c.h.b16 %v703
      %v1429 = vunpack.c.l.b16 %v704
      %v1430 = vunpack.c.h.b16 %v704
      %v1431 = vunpack.c.l.b16 %v705
      %v1432 = vunpack.c.h.b16 %v705
      %v1433 = vunpack.c.l.b16 %v706
      %v1434 = vunpack.c.h.b16 %v706
      %v1435 = vunpack.c.l.b16 %v707
      %v1436 = vunpack.c.h.b16 %v707
      %v1437 = vunpack.c.l.b16 %v708
      %v1438 = vunpack.c.h.b16 %v708
      %v1439 = vunpack.c.l.b16 %v709
      %v1440 = vunpack.c.h.b16 %v709
      %v1441 = vunpack.c.l.b16 %v710
      %v1442 = vunpack.c.h.b16 %v710
      %v1443 = vunpack.c.l.b16 %v711
      %v1444 = vunpack.c.h.b16 %v711
      %v1445 = vunpack.c.l.b16 %v712
      %v1446 = vunpack.c.h.b16 %v712
      %v1447 = vunpack.c.l.b16 %v713
      %v1448 = vunpack.c.h.b16 %v713
      %v1449 = vunpack.c.l.b16 %v714
      %v1450 = vunpack.c.h.b16 %v714
      %v1451 = vunpack.c.l.b16 %v715
      %v1452 = vunpack.c.h.b16 %v715
      %v1453 = vunpack.c.l.b16 %v716
      %v1454 = vunpack.c.h.b16 %v716
      %v1455 = vunpack.c.l.b16 %v717
      %v1456 = vunpack.c.h.b16 %v717
      %v1457 = vunpack.c.l.b16 %v718
      %v1458 = vunpack.c.h.b16 %v718
      %v1459 = vunpack.c.l.b16 %v719
      %v1460 = vunpack.c.h.b16 %v719
      %v1461 = vunpack.c.l.b16 %v720
      %v1462 = vunpack.c.h.b16 %v720
      %v1463 = vunpack.c.l.b16 %v721
      %v1464 = vunpack.c.h.b16 %v721
      %v1465 = vunpack.c.l.b16 %v722
      %v1466 = vunpack.c.h.b16 %v722
      %v1467 = vunpack.c.l.b16 %v723
      %v1468 = vunpack.c.h.b16 %v723
      %v1469 = vunpack.c.l.b16 %v724
      %v1470 = vunpack.c.h.b16 %v724
      %v1471 = vunpack.c.l.b16 %v725
      %v1472 = vunpack.c.h.b16 %v725
      %v1473 = vunpack.c.l.b16 %v726
      %v1474 = vunpack.c.h.b16 %v726
      %v1475 = vunpack.c.l.b16 %v727
      %v1476 = vunpack.c.h.b16 %v727
      %v1477 = vunpack.c.l.b16 %v728
      %v1478 = vunpack.c.h.b16 %v728
      %v1479 = vunpack.c.l.b16 %v729
      %v1480 = vunpack.c.h.b16 %v729
      %v1481 = vunpack.c.l.b16 %v730
      %v1482 = vunpack.c.h.b16 %v730
      %v1483 = vunpack.c.l.b16 %v731
      %v1484 = vunpack.c.h.b16 %v731
      %v1485 = vunpack.c.l.b16 %v732
      %v1486 = vunpack.c.h.b16 %v732
      %v1487 = vunpack.c.l.b16 %v733
      %v1488 = vunpack.c.h.b16 %v733
      %v1489 = vunpack.c.l.b16 %v734
      %v1490 = vunpack.c.h.b16 %v734
      %v1491 = vunpack.c.l.b16 %v735
      %v1492 = vunpack.c.h.b16 %v735
      %v1493 = vunpack.c.l.b16 %v736
      %v1494 = vunpack.c.h.b16 %v736
      %v1495 = vunpack.c.l.b16 %v737
      %v1496 = vunpack.c.h.b16 %v737
      %v1497 = vunpack.c.l.b16 %v738
      %v1498 = vunpack.c.h.b16 %v738
      %v1499 = vunpack.c.l.b16 %v739
      %v1500 = vunpack.c.h.b16 %v739
      %v1501 = vunpack.c.l.b16 %v740
      %v1502 = vunpack.c.h.b16 %v740
      %v1503 = vunpack.c.l.b16 %v741
      %v1504 = vunpack.c.h.b16 %v741
      %v1505 = vunpack.c.l.b16 %v742
      %v1506 = vunpack.c.h.b16 %v742
      %v1507 = vunpack.c.l.b16 %v743
      %v1508 = vunpack.c.h.b16 %v743
      %v1509 = vunpack.c.l.b16 %v744
      %v1510 = vunpack.c.h.b16 %v744
      %v1511 = vunpack.c.l.b16 %v745
      %v1512 = vunpack.c.h.b16 %v745
      %v1513 = vunpack.c.l.b16 %v746
      %v1514 = vunpack.c.h.b16 %v746
      %v1515 = vunpack.c.l.b16 %v747
      %v1516 = vunpack.c.h.b16 %v747
      %v1517 = vunpack.c.l.b16 %v748
      %v1518 = vunpack.c.h.b16 %v748
      %v1519 = vunpack.c.l.b16 %v749
      %v1520 = vunpack.c.h.b16 %v749
      %v1521 = vunpack.c.l.b16 %v750
      %v1522 = vunpack.c.h.b16 %v750
      %v1523 = vunpack.c.l.b16 %v751
      %v1524 = vunpack.c.h.b16 %v751
      %v1525 = vunpack.c.l.b16 %v752
      %v1526 = vunpack.c.h.b16 %v752
      %v1527 = vunpack.c.l.b16 %v753
      %v1528 = vunpack.c.h.b16 %v753
      %v1529 = vunpack.c.l.b16 %v754
      %v1530 = vunpack.c.h.b16 %v754
      %v1531 = vunpack.c.l.b16 %v755
      %v1532 = vunpack.c.h.b16 %v755
      %v1533 = vunpack.c.l.b16 %v756
      %v1534 = vunpack.c.h.b16 %v756
      %v1535 = vunpack.c.l.b16 %v757
      %v1536 = vunpack.c.h.b16 %v757
      %v1537 = vunpack.c.l.b16 %v758
      %v1538 = vunpack.c.h.b16 %v758
      %v1539 = vunpack.c.l.b16 %v759
      %v1540 = vunpack.c.h.b16 %v759
      %v1541 = vunpack.c.l.b16 %v760
      %v1542 = vunpack.c.h.b16 %v760
      %v1543 = vunpack.c.l.b16 %v761
      %v1544 = vunpack.c.h.b16 %v761
      %v1545 = vunpack.c.l.b16 %v762
      %v1546 = vunpack.c.h.b16 %v762
      %v1547 = vunpack.c.l.b16 %v763
      %v1548 = vunpack.c.h.b16 %v763
      %v1549 = vunpack.c.l.b16 %v764
      %v1550 = vunpack.c.h.b16 %v764
      %v1551 = vunpack.c.l.b16 %v765
      %v1552 = vunpack.c.h.b16 %v765
      %v1553 = vunpack.c.l.b16 %v766
      %v1554 = vunpack.c.h.b16 %v766
      %v1555 = vunpack.c.l.b16 %v767
      %v1556 = vunpack.c.h.b16 %v767
      %v1557 = vunpack.c.l.b16 %v768
      %v1558 = vunpack.c.h.b16 %v768
      %v1559 = vunpack.c.l.b16 %v769
      %v1560 = vunpack.c.h.b16 %v769
      %v1561 = vunpack.c.l.b16 %v770
      %v1562 = vunpack.c.h.b16 %v770
      %v1563 = vunpack.c.l.b16 %v771
      %v1564 = vunpack.c.h.b16 %v771
      %v1565 = vunpack.c.l.b16 %v772
      %v1566 = vunpack.c.h.b16 %v772
      %v1567 = vunpack.c.l.b16 %v773
      %v1568 = vunpack.c.h.b16 %v773
      %v1569 = vunpack.c.l.b16 %v774
      %v1570 = vunpack.c.h.b16 %v774
      %v1571 = vunpack.c.l.b16 %v775
      %v1572 = vunpack.c.h.b16 %v775
      %v1573 = vunpack.c.l.b16 %v776
      %v1574 = vunpack.c.h.b16 %v776
      %v1575 = vunpack.c.l.b16 %v777
      %v1576 = vunpack.c.h.b16 %v777
      %v1577 = vunpack.c.l.b16 %v778
      %v1578 = vunpack.c.h.b16 %v778
      %v1579 = vunpack.c.l.b16 %v779
      %v1580 = vunpack.c.h.b16 %v779
      %v1581 = vunpack.c.l.b16 %v780
      %v1582 = vunpack.c.h.b16 %v780
      %v1583 = vunpack.c.l.b16 %v781
      %v1584 = vunpack.c.h.b16 %v781
      %v1585 = vunpack.c.l.b16 %v782
      %v1586 = vunpack.c.h.b16 %v782
      %v1587 = vunpack.c.l.b16 %v783
      %v1588 = vunpack.c.h.b16 %v783
      %v1589 = vunpack.c.l.b16 %v784
      %v1590 = vunpack.c.h.b16 %v784
      %v1591 = vunpack.c.l.b16 %v785
      %v1592 = vunpack.c.h.b16 %v785
      %v1593 = vunpack.c.l.b16 %v786
      %v1594 = vunpack.c.h.b16 %v786
      %v1595 = vunpack.c.l.b16 %v787
      %v1596 = vunpack.c.h.b16 %v787
      %v1597 = vunpack.c.l.b16 %v788
      %v1598 = vunpack.c.h.b16 %v788
      %v1599 = vunpack.c.l.b16 %v789
      %v1600 = vunpack.c.h.b16 %v789
      %v1601 = vunpack.c.l.b16 %v790
      %v1602 = vunpack.c.h.b16 %v790
      %v1603 = vunpack.c.l.b16 %v791
      %v1604 = vunpack.c.h.b16 %v791
      %v1605 = vunpack.c.l.b16 %v792
      %v1606 = vunpack.c.h.b16 %v792
      %v1607 = vunpack.c.l.b16 %v793
      %v1608 = vunpack.c.h.b16 %v793
      %v1609 = vunpack.c.l.b16 %v794
      %v1610 = vunpack.c.h.b16 %v794
      %v1611 = vunpack.c.l.b16 %v795
      %v1612 = vunpack.c.h.b16 %v795
      %v1613 = vunpack.c.l.b16 %v796
      %v1614 = vunpack.c.h.b16 %v796
      %v1615 = vunpack.c.l.b16 %v797
      %v1616 = vunpack.c.h.b16 %v797
      %v1617 = vunpack.c.l.b16 %v798
      %v1618 = vunpack.c.h.b16 %v798
      %v1619 = vunpack.c.l.b16 %v799
      %v1620 = vunpack.c.h.b16 %v799
      %v1621 = vunpack.c.l.b16 %v800
      %v1622 = vunpack.c.h.b16 %v800
      %v1623 = vunpack.c.l.b16 %v801
      %v1624 = vunpack.c.h.b16 %v801
      %v1625 = vunpack.c.l.b16 %v802
      %v1626 = vunpack.c.h.b16 %v802
      %v1627 = vunpack.c.l.b16 %v803
      %v1628 = vunpack.c.h.b16 %v803
      %v1629 = vunpack.c.l.b16 %v804
      %v1630 = vunpack.c.h.b16 %v804
      %v1631 = vunpack.c.l.b16 %v805
      %v1632 = vunpack.c.h.b16 %v805
      %v1633 = vunpack.c.l.b16 %v806
      %v1634 = vunpack.c.h.b16 %v806
      %v1635 = vunpack.c.l.b16 %v807
      %v1636 = vunpack.c.h.b16 %v807
      %v1637 = vunpack.c.l.b16 %v808
      %v1638 = vunpack.c.h.b16 %v808
      %v1639 = vunpack.c.l.b16 %v809
      %v1640 = vunpack.c.h.b16 %v809
      %v1641 = vunpack.c.l.b16 %v810
      %v1642 = vunpack.c.h.b16 %v810
      %v1643 = vunpack.c.l.b16 %v811
      %v1644 = vunpack.c.h.b16 %v811
      %v1645 = vunpack.c.l.b16 %v812
      %v1646 = vunpack.c.h.b16 %v812
      %v1647 = vunpack.c.l.b16 %v813
      %v1648 = vunpack.c.h.b16 %v813
      %v1649 = vunpack.c.l.b16 %v814
      %v1650 = vunpack.c.h.b16 %v814
      %v1651 = vunpack.c.l.b16 %v815
      %v1652 = vunpack.c.h.b16 %v815
      %v1653 = vunpack.c.l.b16 %v816
      %v1654 = vunpack.c.h.b16 %v816
      %v1655 = vunpack.c.l.b16 %v817
      %v1656 = vunpack.c.h.b16 %v817
      %v1657 = vunpack.c.l.b16 %v818
      %v1658 = vunpack.c.h.b16 %v818
      %v1659 = vunpack.c.l.b16 %v819
      %v1660 = vunpack.c.h.b16 %v819
      %v1661 = vunpack.c.l.b16 %v820
      %v1662 = vunpack.c.h.b16 %v820
      %v1663 = vunpack.c.l.b16 %v821
      %v1664 = vunpack.c.h.b16 %v821
      %v1665 = vunpack.c.l.b16 %v822
      %v1666 = vunpack.c.h.b16 %v822
      %v1667 = vunpack.c.l.b16 %v823
      %v1668 = vunpack.c.h.b16 %v823
      %v1669 = vunpack.c.l.b16 %v824
      %v1670 = vunpack.c.h.b16 %v824
      %v1671 = vunpack.c.l.b16 %v825
      %v1672 = vunpack.c.h.b16 %v825
      %v1673 = vunpack.c.l.b16 %v826
      %v1674 = vunpack.c.h.b16 %v826
      %v1675 = vunpack.c.l.b16 %v827
      %v1676 = vunpack.c.h.b16 %v827
      %v1677 = vunpack.c.l.b16 %v828
      %v1678 = vunpack.c.h.b16 %v828
      %v1679 = vunpack.c.l.b16 %v829
      %v1680 = vunpack.c.h.b16 %v829
      %v1681 = vunpack.c.l.b16 %v830
      %v1682 = vunpack.c.h.b16 %v830
      %v1683 = vunpack.c.l.b16 %v831
      %v1684 = vunpack.c.h.b16 %v831
      %v1685 = vunpack.c.l.b16 %v832
      %v1686 = vunpack.c.h.b16 %v832
      %v1687 = vunpack.c.l.b16 %v833
      %v1688 = vunpack.c.h.b16 %v833
      %v1689 = vunpack.c.l.b16 %v834
      %v1690 = vunpack.c.h.b16 %v834
      %v1691 = vunpack.c.l.b16 %v835
      %v1692 = vunpack.c.h.b16 %v835
      %v1693 = vunpack.c.l.b16 %v836
      %v1694 = vunpack.c.h.b16 %v836
      %v1695 = vunpack.c.l.b16 %v837
      %v1696 = vunpack.c.h.b16 %v837
      %v1697 = vunpack.c.l.b16 %v838
      %v1698 = vunpack.c.h.b16 %v838
      %v1699 = vunpack.c.l.b16 %v839
      %v1700 = vunpack.c.h.b16 %v839
      %v1701 = vunpack.c.l.b16 %v840
      %v1702 = vunpack.c.h.b16 %v840
      %v1703 = vunpack.c.l.b16 %v841
      %v1704 = vunpack.c.h.b16 %v841
      %v1705 = vunpack.c.l.b16 %v842
      %v1706 = vunpack.c.h.b16 %v842
      %v1707 = vunpack.c.l.b16 %v843
      %v1708 = vunpack.c.h.b16 %v843
      %v1709 = vunpack.c.l.b16 %v844
      %v1710 = vunpack.c.h.b16 %v844
      %v1711 = vunpack.c.l.b16 %v845
      %v1712 = vunpack.c.h.b16 %v845
      %v1713 = vunpack.c.l.b16 %v846
      %v1714 = vunpack.c.h.b16 %v846
      %v1715 = vunpack.c.l.b16 %v847
      %v1716 = vunpack.c.h.b16 %v847
      %v1717 = vunpack.c.l.b16 %v848
      %v1718 = vunpack.c.h.b16 %v848
      %v1719 = vunpack.c.l.b16 %v849
      %v1720 = vunpack.c.h.b16 %v849
      %v1721 = vunpack.c.l.b16 %v850
      %v1722 = vunpack.c.h.b16 %v850
      %v1723 = vunpack.c.l.b16 %v851
      %v1724 = vunpack.c.h.b16 %v851
      %v1725 = vunpack.c.l.b16 %v852
      %v1726 = vunpack.c.h.b16 %v852
      %v1727 = vunpack.c.l.b16 %v853
      %v1728 = vunpack.c.h.b16 %v853
      %v1729 = vunpack.c.l.b16 %v854
      %v1730 = vunpack.c.h.b16 %v854
      %v1731 = vunpack.c.l.b16 %v855
      %v1732 = vunpack.c.h.b16 %v855
      %v1733 = vunpack.c.l.b16 %v856
      %v1734 = vunpack.c.h.b16 %v856
      %v1735 = vpack.c.b16 %v1165, %v1159
      %v1736 = vpack.c.b16 %v1166, %v1160
      %v1737 = vpack.c.b16 %v1167, %v1161
      %v1738 = vpack.c.b16 %v1168, %v1162
      %v1739 = vpack.c.b16 %v1169, %v1163
      %v1740 = vpack.c.b16 %v1170, %v1164
      %v1741 = vpack.c.b16 %v1177, %v1171
      %v1742 = vpack.c.b16 %v1178, %v1172
      %v1743 = vpack.c.b16 %v1179, %v1173
      %v1744 = vpack.c.b16 %v1180, %v1174
      %v1745 = vpack.c.b16 %v1181, %v1175
      %v1746 = vpack.c.b16 %v1182, %v1176
      %v1747 = vpack.c.b16 %v1189, %v1183
      %v1748 = vpack.c.b16 %v1190, %v1184
      %v1749 = vpack.c.b16 %v1191, %v1185
      %v1750 = vpack.c.b16 %v1192, %v1186
      %v1751 = vpack.c.b16 %v1193, %v1187
      %v1752 = vpack.c.b16 %v1194, %v1188
      %v1753 = vpack.c.b16 %v1201, %v1195
      %v1754 = vpack.c.b16 %v1202, %v1196
      %v1755 = vpack.c.b16 %v1203, %v1197
      %v1756 = vpack.c.b16 %v1204, %v1198
      %v1757 = vpack.c.b16 %v1205, %v1199
      %v1758 = vpack.c.b16 %v1206, %v1200
      %v1759 = vpack.c.b16 %v1213, %v1207
      %v1760 = vpack.c.b16 %v1214, %v1208
      %v1761 = vpack.c.b16 %v1215, %v1209
      %v1762 = vpack.c.b16 %v1216, %v1210
      %v1763 = vpack.c.b16 %v1217, %v1211
      %v1764 = vpack.c.b16 %v1218, %v1212
      %v1765 = vpack.c.b16 %v1225, %v1219
      %v1766 = vpack.c.b16 %v1226, %v1220
      %v1767 = vpack.c.b16 %v1227, %v1221
      %v1768 = vpack.c.b16 %v1228, %v1222
      %v1769 = vpack.c.b16 %v1229, %v1223
      %v1770 = vpack.c.b16 %v1230, %v1224
      %v1771 = vpack.c.b16 %v1237, %v1231
      %v1772 = vpack.c.b16 %v1238, %v1232
      %v1773 = vpack.c.b16 %v1239, %v1233
      %v1774 = vpack.c.b16 %v1240, %v1234
      %v1775 = vpack.c.b16 %v1241, %v1235
      %v1776 = vpack.c.b16 %v1242, %v1236
      %v1777 = vpack.c.b16 %v1249, %v1243
      %v1778 = vpack.c.b16 %v1250, %v1244
      %v1779 = vpack.c.b16 %v1251, %v1245
      %v1780 = vpack.c.b16 %v1252, %v1246
      %v1781 = vpack.c.b16 %v1253, %v1247
      %v1782 = vpack.c.b16 %v1254, %v1248
      %v1783 = vpack.c.b16 %v1261, %v1255
      %v1784 = vpack.c.b16 %v1262, %v1256
      %v1785 = vpack.c.b16 %v1263, %v1257
      %v1786 = vpack.c.b16 %v1264, %v1258
      %v1787 = vpack.c.b16 %v1265, %v1259
      %v1788 = vpack.c.b16 %v1266, %v1260
      %v1789 = vpack.c.b16 %v1273, %v1267
      %v1790 = vpack.c.b16 %v1274, %v1268
      %v1791 = vpack.c.b16 %v1275, %v1269
      %v1792 = vpack.c.b16 %v1276, %v1270
      %v1793 = vpack.c.b16 %v1277, %v1271
      %v1794 = vpack.c.b16 %v1278, %v1272
      %v1795 = vpack.c.b16 %v1285, %v1279
      %v1796 = vpack.c.b16 %v1286, %v1280
      %v1797 = vpack.c.b16 %v1287, %v1281
      %v1798 = vpack.c.b16 %v1288, %v1282
      %v1799 = vpack.c.b16 %v1289, %v1283
      %v1800 = vpack.c.b16 %v1290, %v1284
      %v1801 = vpack.c.b16 %v1297, %v1291
      %v1802 = vpack.c.b16 %v1298, %v1292
      %v1803 = vpack.c.b16 %v1299, %v1293
      %v1804 = vpack.c.b16 %v1300, %v1294
      %v1805 = vpack.c.b16 %v1301, %v1295
      %v1806 = vpack.c.b16 %v1302, %v1296
      %v1807 = vpack.c.b16 %v1309, %v1303
      %v1808 = vpack.c.b16 %v1310, %v1304
      %v1809 = vpack.c.b16 %v1311, %v1305
      %v1810 = vpack.c.b16 %v1312, %v1306
      %v1811 = vpack.c.b16 %v1313, %v1307
      %v1812 = vpack.c.b16 %v1314, %v1308
      %v1813 = vpack.c.b16 %v1321, %v1315
      %v1814 = vpack.c.b16 %v1322, %v1316
      %v1815 = vpack.c.b16 %v1323, %v1317
      %v1816 = vpack.c.b16 %v1324, %v1318
      %v1817 = vpack.c.b16 %v1325, %v1319
      %v1818 = vpack.c.b16 %v1326, %v1320
      %v1819 = vpack.c.b16 %v1333, %v1327
      %v1820 = vpack.c.b16 %v1334, %v1328
      %v1821 = vpack.c.b16 %v1335, %v1329
      %v1822 = vpack.c.b16 %v1336, %v1330
      %v1823 = vpack.c.b16 %v1337, %v1331
      %v1824 = vpack.c.b16 %v1338, %v1332
      %v1825 = vpack.c.b16 %v1345, %v1339
      %v1826 = vpack.c.b16 %v1346, %v1340
      %v1827 = vpack.c.b16 %v1347, %v1341
      %v1828 = vpack.c.b16 %v1348, %v1342
      %v1829 = vpack.c.b16 %v1349, %v1343
      %v1830 = vpack.c.b16 %v1350, %v1344
      %v1831 = vpack.c.b16 %v1357, %v1351
      %v1832 = vpack.c.b16 %v1358, %v1352
      %v1833 = vpack.c.b16 %v1359, %v1353
      %v1834 = vpack.c.b16 %v1360, %v1354
      %v1835 = vpack.c.b16 %v1361, %v1355
      %v1836 = vpack.c.b16 %v1362, %v1356
      %v1837 = vpack.c.b16 %v1369, %v1363
      %v1838 = vpack.c.b16 %v1370, %v1364
      %v1839 = vpack.c.b16 %v1371, %v1365
      %v1840 = vpack.c.b16 %v1372, %v1366
      %v1841 = vpack.c.b16 %v1373, %v1367
      %v1842 = vpack.c.b16 %v1374, %v1368
      %v1843 = vpack.c.b16 %v1381, %v1375
      %v1844 = vpack.c.b16 %v1382, %v1376
      %v1845 = vpack.c.b16 %v1383, %v1377
      %v1846 = vpack.c.b16 %v1384, %v1378
      %v1847 = vpack.c.b16 %v1385, %v1379
      %v1848 = vpack.c.b16 %v1386, %v1380
      %v1849 = vpack.c.b16 %v1393, %v1387
      %v1850 = vpack.c.b16 %v1394, %v1388
      %v1851 = vpack.c.b16 %v1395, %v1389
      %v1852 = vpack.c.b16 %v1396, %v1390
      %v1853 = vpack.c.b16 %v1397, %v1391
      %v1854 = vpack.c.b16 %v1398, %v1392
      %v1855 = vpack.c.b16 %v1405, %v1399
      %v1856 = vpack.c.b16 %v1406, %v1400
      %v1857 = vpack.c.b16 %v1407, %v1401
      %v1858 = vpack.c.b16 %v1408, %v1402
      %v1859 = vpack.c.b16 %v1409, %v1403
      %v1860 = vpack.c.b16 %v1410, %v1404
      %v1861 = vpack.c.b16 %v1417, %v1411
      %v1862 = vpack.c.b16 %v1418, %v1412
      %v1863 = vpack.c.b16 %v1419, %v1413
      %v1864 = vpack.c.b16 %v1420, %v1414
      %v1865 = vpack.c.b16 %v1421, %v1415
      %v1866 = vpack.c.b16 %v1422, %v1416
      %v1867 = vpack.c.b16 %v1429, %v1423
      %v1868 = vpack.c.b16 %v1430, %v1424
      %v1869 = vpack.c.b16 %v1431, %v1425
      %v1870 = vpack.c.b16 %v1432, %v1426
      %v1871 = vpack.c.b16 %v1433, %v1427
      %v1872 = vpack.c.b16 %v1434, %v1428
      %v1873 = vpack.c.b16 %v1441, %v1435
      %v1874 = vpack.c.b16 %v1442, %v1436
      %v1875 = vpack.c.b16 %v1443, %v1437
      %v1876 = vpack.c.b16 %v1444, %v1438
      %v1877 = vpack.c.b16 %v1445, %v1439
      %v1878 = vpack.c.b16 %v1446, %v1440
      %v1879 = vpack.c.b16 %v1453, %v1447
      %v1880 = vpack.c.b16 %v1454, %v1448
      %v1881 = vpack.c.b16 %v1455, %v1449
      %v1882 = vpack.c.b16 %v1456, %v1450
      %v1883 = vpack.c.b16 %v1457, %v1451
      %v1884 = vpack.c.b16 %v1458, %v1452
      %v1885 = vpack.c.b16 %v1465, %v1459
      %v1886 = vpack.c.b16 %v1466, %v1460
      %v1887 = vpack.c.b16 %v1467, %v1461
      %v1888 = vpack.c.b16 %v1468, %v1462
      %v1889 = vpack.c.b16 %v1469, %v1463
      %v1890 = vpack.c.b16 %v1470, %v1464
      %v1891 = vpack.c.b16 %v1477, %v1471
      %v1892 = vpack.c.b16 %v1478, %v1472
      %v1893 = vpack.c.b16 %v1479, %v1473
      %v1894 = vpack.c.b16 %v1480, %v1474
      %v1895 = vpack.c.b16 %v1481, %v1475
      %v1896 = vpack.c.b16 %v1482, %v1476
      %v1897 = vpack.c.b16 %v1489, %v1483
      %v1898 = vpack.c.b16 %v1490, %v1484
      %v1899 = vpack.c.b16 %v1491, %v1485
      %v1900 = vpack.c.b16 %v1492, %v1486
      %v1901 = vpack.c.b16 %v1493, %v1487
      %v1902 = vpack.c.b16 %v1494, %v1488
      %v1903 = vpack.c.b16 %v1501, %v1495
      %v1904 = vpack.c.b16 %v1502, %v1496
      %v1905 = vpack.c.b16 %v1503, %v1497
      %v1906 = vpack.c.b16 %v1504, %v1498
      %v1907 = vpack.c.b16 %v1505, %v1499
      %v1908 = vpack.c.b16 %v1506, %v1500
      %v1909 = vpack.c.b16 %v1513, %v1507
      %v1910 = vpack.c.b16 %v1514, %v1508
      %v1911 = vpack.c.b16 %v1515, %v1509
      %v1912 = vpack.c.b16 %v1516, %v1510
      %v1913 = vpack.c.b16 %v1517, %v1511
      %v1914 = vpack.c.b16 %v1518, %v1512
      %v1915 = vpack.c.b16 %v1525, %v1519
      %v1916 = vpack.c.b16 %v1526, %v1520
      %v1917 = vpack.c.b16 %v1527, %v1521
      %v1918 = vpack.c.b16 %v1528, %v1522
      %v1919 = vpack.c.b16 %v1529, %v1523
      %v1920 = vpack.c.b16 %v1530, %v1524
      %v1921 = vpack.c.b16 %v1537, %v1531
      %v1922 = vpack.c.b16 %v1538, %v1532
      %v1923 = vpack.c.b16 %v1539, %v1533
      %v1924 = vpack.c.b16 %v1540, %v1534
      %v1925 = vpack.c.b16 %v1541, %v1535
      %v1926 = vpack.c.b16 %v1542, %v1536
      %v1927 = vpack.c.b16 %v1549, %v1543
      %v1928 = vpack.c.b16 %v1550, %v1544
      %v1929 = vpack.c.b16 %v1551, %v1545
      %v1930 = vpack.c.b16 %v1552, %v1546
      %v1931 = vpack.c.b16 %v1553, %v1547
      %v1932 = vpack.c.b16 %v1554, %v1548
      %v1933 = vpack.c.b16 %v1561, %v1555
      %v1934 = vpack.c.b16 %v1562, %v1556
      %v1935 = vpack.c.b16 %v1563, %v1557
      %v1936 = vpack.c.b16 %v1564, %v1558
      %v1937 = vpack.c.b16 %v1565, %v1559
      %v1938 = vpack.c.b16 %v1566, %v1560
      %v1939 = vpack.c.b16 %v1573, %v1567
      %v1940 = vpack.c.b16 %v1574, %v1568
      %v1941 = vpack.c.b16 %v1575, %v1569
      %v1942 = vpack.c.b16 %v1576, %v1570
      %v1943 = vpack.c.b16 %v1577, %v1571
      %v1944 = vpack.c.b16 %v1578, %v1572
      %v1945 = vpack.c.b16 %v1585, %v1579
      %v1946 = vpack.c.b16 %v1586, %v1580
      %v1947 = vpack.c.b16 %v1587, %v1581
      %v1948 = vpack.c.b16 %v1588, %v1582
      %v1949 = vpack.c.b16 %v1589, %v1583
      %v1950 = vpack.c.b16 %v1590, %v1584
      %v1951 = vpack.c.b16 %v1597, %v1591
      %v1952 = vpack.c.b16 %v1598, %v1592
      %v1953 = vpack.c.b16 %v1599, %v1593
      %v1954 = vpack.c.b16 %v1600, %v1594
      %v1955 = vpack.c.b16 %v1601, %v1595
      %v1956 = vpack.c.b16 %v1602, %v1596
      %v1957 = vpack.c.b16 %v1609, %v1603
      %v1958 = vpack.c.b16 %v1610, %v1604
      %v1959 = vpack.c.b16 %v1611, %v1605
      %v1960 = vpack.c.b16 %v1612, %v1606
      %v1961 = vpack.c.b16 %v1613, %v1607
      %v1962 = vpack.c.b16 %v1614, %v1608
      %v1963 = vpack.c.b16 %v1621, %v1615
      %v1964 = vpack.c.b16 %v1622, %v1616
      %v1965 = vpack.c.b16 %v1623, %v1617
      %v1966 = vpack.c.b16 %v1624, %v1618
      %v1967 = vpack.c.b16 %v1625, %v1619
      %v1968 = vpack.c.b16 %v1626, %v1620
      %v1969 = vpack.c.b16 %v1633, %v1627
      %v1970 = vpack.c.b16 %v1634, %v1628
      %v1971 = vpack.c.b16 %v1635, %v1629
      %v1972 = vpack.c.b16 %v1636, %v1630
      %v1973 = vpack.c.b16 %v1637, %v1631
      %v1974 = vpack.c.b16 %v1638, %v1632
      %v1975 = vpack.c.b16 %v1645, %v1639
      %v1976 = vpack.c.b16 %v1646, %v1640
      %v1977 = vpack.c.b16 %v1647, %v1641
      %v1978 = vpack.c.b16 %v1648, %v1642
      %v1979 = vpack.c.b16 %v1649, %v1643
      %v1980 = vpack.c.b16 %v1650, %v1644
      %v1981 = vpack.c.b16 %v1657, %v1651
      %v1982 = vpack.c.b16 %v1658, %v1652
      %v1983 = vpack.c.b16 %v1659, %v1653
      %v1984 = vpack.c.b16 %v1660, %v1654
      %v1985 = vpack.c.b16 %v1661, %v1655
      %v1986 = vpack.c.b16 %v1662, %v1656
      %v1987 = vpack.c.b16 %v1669, %v1663
      %v1988 = vpack.c.b16 %v1670, %v1664
      %v1989 = vpack.c.b16 %v1671, %v1665
      %v1990 = vpack.c.b16 %v1672, %v1666
      %v1991 = vpack.c.b16 %v1673, %v1667
      %v1992 = vpack.c.b16 %v1674, %v1668
      %v1993 = vpack.c.b16 %v1681, %v1675
      %v1994 = vpack.c.b16 %v1682, %v1676
      %v1995 = vpack.c.b16 %v1683, %v1677
      %v1996 = vpack.c.b16 %v1684, %v1678
      %v1997 = vpack.c.b16 %v1685, %v1679
      %v1998 = vpack.c.b16 %v1686, %v1680
      %v1999 = vpack.c.b16 %v1693, %v1687
      %v2000 = vpack.c.b16 %v1694, %v1688
      %v2001 = vpack.c.b16 %v1695, %v1689
      %v2002 = vpack.c.b16 %v1696, %v1690
      %v2003 = vpack.c.b16 %v1697, %v1691
      %v2004 = vpack.c.b16 %v1698, %v1692
      %v2005 = vpack.c.b16 %v1705, %v1699
      %v2006 = vpack.c.b16 %v1706, %v1700
      %v2007 = vpack.c.b16 %v1707, %v1701
      %v2008 = vpack.c.b16 %v1708, %v1702
      %v2009 = vpack.c.b16 %v1709, %v1703
      %v2010 = vpack.c.b16 %v1710, %v1704
      %v2011 = vpack.c.b16 %v1717, %v1711
      %v2012 = vpack.c.b16 %v1718, %v1712
      %v2013 = vpack.c.b16 %v1719, %v1713
      %v2014 = vpack.c.b16 %v1720, %v1714
      %v2015 = vpack.c.b16 %v1721, %v1715
      %v2016 = vpack.c.b16 %v1722, %v1716
      %v2017 = vpack.c.b16 %v1729, %v1723
      %v2018 = vpack.c.b16 %v1730, %v1724
      %v2019 = vpack.c.b16 %v1731, %v1725
      %v2020 = vpack.c.b16 %v1732, %v1726
      %v2021 = vpack.c.b16 %v1733, %v1727
      %v2022 = vpack.c.b16 %v1734, %v1728
      %2311 = vmatpush.bf16.msra.mxu0 %v1777
      %2312 = vmatpush.bf16.msra.mxu0 %v1771
      %2313 = vmatpush.bf16.msra.mxu0 %v1765
      %2314 = vmatpush.bf16.msra.mxu0 %v1759
      %2315 = vmatpush.bf16.msra.mxu0 %v1753
      %2316 = vmatpush.bf16.msra.mxu0 %v1747
      %2317 = vmatpush.bf16.msra.mxu0 %v1741
      %2318 = vmatpush.bf16.msra.mxu0 %v1735
      %2319 = vmatmul.bf16.gmra.mxu0 %v563
      %v2320 = vpop.f32.mrf.mxu0
      %v2321 = vadd.f32 %v859, %v2320
      %v2322 = vpop.f32.mrf.mxu0
      %2323 = vdwg.mxu0
      %2324 = vmatpush.bf16.msra.mxu0 %v1825
      %2325 = vmatpush.bf16.msra.mxu0 %v1819
      %2326 = vmatpush.bf16.msra.mxu0 %v1813
      %2327 = vmatpush.bf16.msra.mxu0 %v1807
      %2328 = vmatpush.bf16.msra.mxu0 %v1801
      %2329 = vmatpush.bf16.msra.mxu0 %v1795
      %2330 = vmatpush.bf16.msra.mxu0 %v1789
      %2331 = vmatpush.bf16.msra.mxu0 %v1783
      %2332 = vmatmul.bf16.gmra.mxu0 %v564
      %v2333 = vpop.f32.mrf.mxu0
      %v2334 = vadd.f32 %v2321, %v2333
      %v2335 = vpop.f32.mrf.mxu0
      %2336 = vdwg.mxu0
      %2337 = vmatpush.bf16.msra.mxu0 %v1873
      %2338 = vmatpush.bf16.msra.mxu0 %v1867
      %2339 = vmatpush.bf16.msra.mxu0 %v1861
      %2340 = vmatpush.bf16.msra.mxu0 %v1855
      %2341 = vmatpush.bf16.msra.mxu0 %v1849
      %2342 = vmatpush.bf16.msra.mxu0 %v1843
      %2343 = vmatpush.bf16.msra.mxu0 %v1837
      %2344 = vmatpush.bf16.msra.mxu0 %v1831
      %2345 = vmatmul.bf16.gmra.mxu0 %v565
      %v2346 = vpop.f32.mrf.mxu0
      %v2347 = vadd.f32 %v2334, %v2346
      %v2348 = vpop.f32.mrf.mxu0
      %2349 = vdwg.mxu0
      %2350 = vmatpush.bf16.msra.mxu0 %v1921
      %2351 = vmatpush.bf16.msra.mxu0 %v1915
      %2352 = vmatpush.bf16.msra.mxu0 %v1909
      %2353 = vmatpush.bf16.msra.mxu0 %v1903
      %2354 = vmatpush.bf16.msra.mxu0 %v1897
      %2355 = vmatpush.bf16.msra.mxu0 %v1891
      %2356 = vmatpush.bf16.msra.mxu0 %v1885
      %2357 = vmatpush.bf16.msra.mxu0 %v1879
      %2358 = vmatmul.bf16.gmra.mxu0 %v566
      %v2359 = vpop.f32.mrf.mxu0
      %v2360 = vadd.f32 %v2347, %v2359
      %v2361 = vpop.f32.mrf.mxu0
      %2362 = vdwg.mxu0
      %2363 = vmatpush.bf16.msra.mxu0 %v1969
      %2364 = vmatpush.bf16.msra.mxu0 %v1963
      %2365 = vmatpush.bf16.msra.mxu0 %v1957
      %2366 = vmatpush.bf16.msra.mxu0 %v1951
      %2367 = vmatpush.bf16.msra.mxu0 %v1945
      %2368 = vmatpush.bf16.msra.mxu0 %v1939
      %2369 = vmatpush.bf16.msra.mxu0 %v1933
      %2370 = vmatpush.bf16.msra.mxu0 %v1927
      %2371 = vmatmul.bf16.gmra.mxu0 %v567
      %v2372 = vpop.f32.mrf.mxu0
      %v2373 = vadd.f32 %v2360, %v2372
      %v2374 = vpop.f32.mrf.mxu0
      %2375 = vdwg.mxu0
      %2376 = vmatpush.bf16.msra.mxu0 %v2017
      %2377 = vmatpush.bf16.msra.mxu0 %v2011
      %2378 = vmatpush.bf16.msra.mxu0 %v2005
      %2379 = vmatpush.bf16.msra.mxu0 %v1999
      %2380 = vmatpush.bf16.msra.mxu0 %v1993
      %2381 = vmatpush.bf16.msra.mxu0 %v1987
      %2382 = vmatpush.bf16.msra.mxu0 %v1981
      %2383 = vmatpush.bf16.msra.mxu0 %v1975
      %2384 = vmatmul.bf16.gmra.mxu0 %v568
      %v2385 = vpop.f32.mrf.mxu0
      %v2386 = vadd.f32 %v2373, %v2385
      %v2387 = vpop.f32.mrf.mxu0
      %2388 = vdwg.mxu0
      %2389 = vmatpush.bf16.msra.mxu0 %v1778
      %2390 = vmatpush.bf16.msra.mxu0 %v1772
      %2391 = vmatpush.bf16.msra.mxu0 %v1766
      %2392 = vmatpush.bf16.msra.mxu0 %v1760
      %2393 = vmatpush.bf16.msra.mxu0 %v1754
      %2394 = vmatpush.bf16.msra.mxu0 %v1748
      %2395 = vmatpush.bf16.msra.mxu0 %v1742
      %2396 = vmatpush.bf16.msra.mxu0 %v1736
      %2397 = vmatmul.bf16.gmra.mxu0 %v563
      %v2398 = vpop.f32.mrf.mxu0
      %v2399 = vadd.f32 %v860, %v2398
      %v2400 = vpop.f32.mrf.mxu0
      %2401 = vdwg.mxu0
      %2402 = vmatpush.bf16.msra.mxu0 %v1826
      %2403 = vmatpush.bf16.msra.mxu0 %v1820
      %2404 = vmatpush.bf16.msra.mxu0 %v1814
      %2405 = vmatpush.bf16.msra.mxu0 %v1808
      %2406 = vmatpush.bf16.msra.mxu0 %v1802
      %2407 = vmatpush.bf16.msra.mxu0 %v1796
      %2408 = vmatpush.bf16.msra.mxu0 %v1790
      %2409 = vmatpush.bf16.msra.mxu0 %v1784
      %2410 = vmatmul.bf16.gmra.mxu0 %v564
      %v2411 = vpop.f32.mrf.mxu0
      %v2412 = vadd.f32 %v2399, %v2411
      %v2413 = vpop.f32.mrf.mxu0
      %2414 = vdwg.mxu0
      %2415 = vmatpush.bf16.msra.mxu0 %v1874
      %2416 = vmatpush.bf16.msra.mxu0 %v1868
      %2417 = vmatpush.bf16.msra.mxu0 %v1862
      %2418 = vmatpush.bf16.msra.mxu0 %v1856
      %2419 = vmatpush.bf16.msra.mxu0 %v1850
      %2420 = vmatpush.bf16.msra.mxu0 %v1844
      %2421 = vmatpush.bf16.msra.mxu0 %v1838
      %2422 = vmatpush.bf16.msra.mxu0 %v1832
      %2423 = vmatmul.bf16.gmra.mxu0 %v565
      %v2424 = vpop.f32.mrf.mxu0
      %v2425 = vadd.f32 %v2412, %v2424
      %v2426 = vpop.f32.mrf.mxu0
      %2427 = vdwg.mxu0
      %2428 = vmatpush.bf16.msra.mxu0 %v1922
      %2429 = vmatpush.bf16.msra.mxu0 %v1916
      %2430 = vmatpush.bf16.msra.mxu0 %v1910
      %2431 = vmatpush.bf16.msra.mxu0 %v1904
      %2432 = vmatpush.bf16.msra.mxu0 %v1898
      %2433 = vmatpush.bf16.msra.mxu0 %v1892
      %2434 = vmatpush.bf16.msra.mxu0 %v1886
      %2435 = vmatpush.bf16.msra.mxu0 %v1880
      %2436 = vmatmul.bf16.gmra.mxu0 %v566
      %v2437 = vpop.f32.mrf.mxu0
      %v2438 = vadd.f32 %v2425, %v2437
      %v2439 = vpop.f32.mrf.mxu0
      %2440 = vdwg.mxu0
      %2441 = vmatpush.bf16.msra.mxu0 %v1970
      %2442 = vmatpush.bf16.msra.mxu0 %v1964
      %2443 = vmatpush.bf16.msra.mxu0 %v1958
      %2444 = vmatpush.bf16.msra.mxu0 %v1952
      %2445 = vmatpush.bf16.msra.mxu0 %v1946
      %2446 = vmatpush.bf16.msra.mxu0 %v1940
      %2447 = vmatpush.bf16.msra.mxu0 %v1934
      %2448 = vmatpush.bf16.msra.mxu0 %v1928
      %2449 = vmatmul.bf16.gmra.mxu0 %v567
      %v2450 = vpop.f32.mrf.mxu0
      %v2451 = vadd.f32 %v2438, %v2450
      %v2452 = vpop.f32.mrf.mxu0
      %2453 = vdwg.mxu0
      %2454 = vmatpush.bf16.msra.mxu0 %v2018
      %2455 = vmatpush.bf16.msra.mxu0 %v2012
      %2456 = vmatpush.bf16.msra.mxu0 %v2006
      %2457 = vmatpush.bf16.msra.mxu0 %v2000
      %2458 = vmatpush.bf16.msra.mxu0 %v1994
      %2459 = vmatpush.bf16.msra.mxu0 %v1988
      %2460 = vmatpush.bf16.msra.mxu0 %v1982
      %2461 = vmatpush.bf16.msra.mxu0 %v1976
      %2462 = vmatmul.bf16.gmra.mxu0 %v568
      %v2463 = vpop.f32.mrf.mxu0
      %v2464 = vadd.f32 %v2451, %v2463
      %v2465 = vpop.f32.mrf.mxu0
      %2466 = vdwg.mxu0
      %2467 = vmatpush.bf16.msra.mxu0 %v1779
      %2468 = vmatpush.bf16.msra.mxu0 %v1773
      %2469 = vmatpush.bf16.msra.mxu0 %v1767
      %2470 = vmatpush.bf16.msra.mxu0 %v1761
      %2471 = vmatpush.bf16.msra.mxu0 %v1755
      %2472 = vmatpush.bf16.msra.mxu0 %v1749
      %2473 = vmatpush.bf16.msra.mxu0 %v1743
      %2474 = vmatpush.bf16.msra.mxu0 %v1737
      %2475 = vmatmul.bf16.gmra.mxu0 %v563
      %v2476 = vpop.f32.mrf.mxu0
      %v2477 = vadd.f32 %v861, %v2476
      %v2478 = vpop.f32.mrf.mxu0
      %2479 = vdwg.mxu0
      %2480 = vmatpush.bf16.msra.mxu0 %v1827
      %2481 = vmatpush.bf16.msra.mxu0 %v1821
      %2482 = vmatpush.bf16.msra.mxu0 %v1815
      %2483 = vmatpush.bf16.msra.mxu0 %v1809
      %2484 = vmatpush.bf16.msra.mxu0 %v1803
      %2485 = vmatpush.bf16.msra.mxu0 %v1797
      %2486 = vmatpush.bf16.msra.mxu0 %v1791
      %2487 = vmatpush.bf16.msra.mxu0 %v1785
      %2488 = vmatmul.bf16.gmra.mxu0 %v564
      %v2489 = vpop.f32.mrf.mxu0
      %v2490 = vadd.f32 %v2477, %v2489
      %v2491 = vpop.f32.mrf.mxu0
      %2492 = vdwg.mxu0
      %2493 = vmatpush.bf16.msra.mxu0 %v1875
      %2494 = vmatpush.bf16.msra.mxu0 %v1869
      %2495 = vmatpush.bf16.msra.mxu0 %v1863
      %2496 = vmatpush.bf16.msra.mxu0 %v1857
      %2497 = vmatpush.bf16.msra.mxu0 %v1851
      %2498 = vmatpush.bf16.msra.mxu0 %v1845
      %2499 = vmatpush.bf16.msra.mxu0 %v1839
      %2500 = vmatpush.bf16.msra.mxu0 %v1833
      %2501 = vmatmul.bf16.gmra.mxu0 %v565
      %v2502 = vpop.f32.mrf.mxu0
      %v2503 = vadd.f32 %v2490, %v2502
      %v2504 = vpop.f32.mrf.mxu0
      %2505 = vdwg.mxu0
      %2506 = vmatpush.bf16.msra.mxu0 %v1923
      %2507 = vmatpush.bf16.msra.mxu0 %v1917
      %2508 = vmatpush.bf16.msra.mxu0 %v1911
      %2509 = vmatpush.bf16.msra.mxu0 %v1905
      %2510 = vmatpush.bf16.msra.mxu0 %v1899
      %2511 = vmatpush.bf16.msra.mxu0 %v1893
      %2512 = vmatpush.bf16.msra.mxu0 %v1887
      %2513 = vmatpush.bf16.msra.mxu0 %v1881
      %2514 = vmatmul.bf16.gmra.mxu0 %v566
      %v2515 = vpop.f32.mrf.mxu0
      %v2516 = vadd.f32 %v2503, %v2515
      %v2517 = vpop.f32.mrf.mxu0
      %2518 = vdwg.mxu0
      %2519 = vmatpush.bf16.msra.mxu0 %v1971
      %2520 = vmatpush.bf16.msra.mxu0 %v1965
      %2521 = vmatpush.bf16.msra.mxu0 %v1959
      %2522 = vmatpush.bf16.msra.mxu0 %v1953
      %2523 = vmatpush.bf16.msra.mxu0 %v1947
      %2524 = vmatpush.bf16.msra.mxu0 %v1941
      %2525 = vmatpush.bf16.msra.mxu0 %v1935
      %2526 = vmatpush.bf16.msra.mxu0 %v1929
      %2527 = vmatmul.bf16.gmra.mxu0 %v567
      %v2528 = vpop.f32.mrf.mxu0
      %v2529 = vadd.f32 %v2516, %v2528
      %v2530 = vpop.f32.mrf.mxu0
      %2531 = vdwg.mxu0
      %2532 = vmatpush.bf16.msra.mxu0 %v2019
      %2533 = vmatpush.bf16.msra.mxu0 %v2013
      %2534 = vmatpush.bf16.msra.mxu0 %v2007
      %2535 = vmatpush.bf16.msra.mxu0 %v2001
      %2536 = vmatpush.bf16.msra.mxu0 %v1995
      %2537 = vmatpush.bf16.msra.mxu0 %v1989
      %2538 = vmatpush.bf16.msra.mxu0 %v1983
      %2539 = vmatpush.bf16.msra.mxu0 %v1977
      %2540 = vmatmul.bf16.gmra.mxu0 %v568
      %v2541 = vpop.f32.mrf.mxu0
      %v2542 = vadd.f32 %v2529, %v2541
      %v2543 = vpop.f32.mrf.mxu0
      %2544 = vdwg.mxu0
      %2545 = vmatpush.bf16.msra.mxu0 %v1780
      %2546 = vmatpush.bf16.msra.mxu0 %v1774
      %2547 = vmatpush.bf16.msra.mxu0 %v1768
      %2548 = vmatpush.bf16.msra.mxu0 %v1762
      %2549 = vmatpush.bf16.msra.mxu0 %v1756
      %2550 = vmatpush.bf16.msra.mxu0 %v1750
      %2551 = vmatpush.bf16.msra.mxu0 %v1744
      %2552 = vmatpush.bf16.msra.mxu0 %v1738
      %2553 = vmatmul.bf16.gmra.mxu0 %v563
      %v2554 = vpop.f32.mrf.mxu0
      %v2555 = vadd.f32 %v862, %v2554
      %v2556 = vpop.f32.mrf.mxu0
      %2557 = vdwg.mxu0
      %2558 = vmatpush.bf16.msra.mxu0 %v1828
      %2559 = vmatpush.bf16.msra.mxu0 %v1822
      %2560 = vmatpush.bf16.msra.mxu0 %v1816
      %2561 = vmatpush.bf16.msra.mxu0 %v1810
      %2562 = vmatpush.bf16.msra.mxu0 %v1804
      %2563 = vmatpush.bf16.msra.mxu0 %v1798
      %2564 = vmatpush.bf16.msra.mxu0 %v1792
      %2565 = vmatpush.bf16.msra.mxu0 %v1786
      %2566 = vmatmul.bf16.gmra.mxu0 %v564
      %v2567 = vpop.f32.mrf.mxu0
      %v2568 = vadd.f32 %v2555, %v2567
      %v2569 = vpop.f32.mrf.mxu0
      %2570 = vdwg.mxu0
      %2571 = vmatpush.bf16.msra.mxu0 %v1876
      %2572 = vmatpush.bf16.msra.mxu0 %v1870
      %2573 = vmatpush.bf16.msra.mxu0 %v1864
      %2574 = vmatpush.bf16.msra.mxu0 %v1858
      %2575 = vmatpush.bf16.msra.mxu0 %v1852
      %2576 = vmatpush.bf16.msra.mxu0 %v1846
      %2577 = vmatpush.bf16.msra.mxu0 %v1840
      %2578 = vmatpush.bf16.msra.mxu0 %v1834
      %2579 = vmatmul.bf16.gmra.mxu0 %v565
      %v2580 = vpop.f32.mrf.mxu0
      %v2581 = vadd.f32 %v2568, %v2580
      %v2582 = vpop.f32.mrf.mxu0
      %2583 = vdwg.mxu0
      %2584 = vmatpush.bf16.msra.mxu0 %v1924
      %2585 = vmatpush.bf16.msra.mxu0 %v1918
      %2586 = vmatpush.bf16.msra.mxu0 %v1912
      %2587 = vmatpush.bf16.msra.mxu0 %v1906
      %2588 = vmatpush.bf16.msra.mxu0 %v1900
      %2589 = vmatpush.bf16.msra.mxu0 %v1894
      %2590 = vmatpush.bf16.msra.mxu0 %v1888
      %2591 = vmatpush.bf16.msra.mxu0 %v1882
      %2592 = vmatmul.bf16.gmra.mxu0 %v566
      %v2593 = vpop.f32.mrf.mxu0
      %v2594 = vadd.f32 %v2581, %v2593
      %v2595 = vpop.f32.mrf.mxu0
      %2596 = vdwg.mxu0
      %2597 = vmatpush.bf16.msra.mxu0 %v1972
      %2598 = vmatpush.bf16.msra.mxu0 %v1966
      %2599 = vmatpush.bf16.msra.mxu0 %v1960
      %2600 = vmatpush.bf16.msra.mxu0 %v1954
      %2601 = vmatpush.bf16.msra.mxu0 %v1948
      %2602 = vmatpush.bf16.msra.mxu0 %v1942
      %2603 = vmatpush.bf16.msra.mxu0 %v1936
      %2604 = vmatpush.bf16.msra.mxu0 %v1930
      %2605 = vmatmul.bf16.gmra.mxu0 %v567
      %v2606 = vpop.f32.mrf.mxu0
      %v2607 = vadd.f32 %v2594, %v2606
      %v2608 = vpop.f32.mrf.mxu0
      %2609 = vdwg.mxu0
      %2610 = vmatpush.bf16.msra.mxu0 %v2020
      %2611 = vmatpush.bf16.msra.mxu0 %v2014
      %2612 = vmatpush.bf16.msra.mxu0 %v2008
      %2613 = vmatpush.bf16.msra.mxu0 %v2002
      %2614 = vmatpush.bf16.msra.mxu0 %v1996
      %2615 = vmatpush.bf16.msra.mxu0 %v1990
      %2616 = vmatpush.bf16.msra.mxu0 %v1984
      %2617 = vmatpush.bf16.msra.mxu0 %v1978
      %2618 = vmatmul.bf16.gmra.mxu0 %v568
      %v2619 = vpop.f32.mrf.mxu0
      %v2620 = vadd.f32 %v2607, %v2619
      %v2621 = vpop.f32.mrf.mxu0
      %2622 = vdwg.mxu0
      %2623 = vmatpush.bf16.msra.mxu0 %v1781
      %2624 = vmatpush.bf16.msra.mxu0 %v1775
      %2625 = vmatpush.bf16.msra.mxu0 %v1769
      %2626 = vmatpush.bf16.msra.mxu0 %v1763
      %2627 = vmatpush.bf16.msra.mxu0 %v1757
      %2628 = vmatpush.bf16.msra.mxu0 %v1751
      %2629 = vmatpush.bf16.msra.mxu0 %v1745
      %2630 = vmatpush.bf16.msra.mxu0 %v1739
      %2631 = vmatmul.bf16.gmra.mxu0 %v563
      %v2632 = vpop.f32.mrf.mxu0
      %v2633 = vadd.f32 %v863, %v2632
      %v2634 = vpop.f32.mrf.mxu0
      %2635 = vdwg.mxu0
      %2636 = vmatpush.bf16.msra.mxu0 %v1829
      %2637 = vmatpush.bf16.msra.mxu0 %v1823
      %2638 = vmatpush.bf16.msra.mxu0 %v1817
      %2639 = vmatpush.bf16.msra.mxu0 %v1811
      %2640 = vmatpush.bf16.msra.mxu0 %v1805
      %2641 = vmatpush.bf16.msra.mxu0 %v1799
      %2642 = vmatpush.bf16.msra.mxu0 %v1793
      %2643 = vmatpush.bf16.msra.mxu0 %v1787
      %2644 = vmatmul.bf16.gmra.mxu0 %v564
      %v2645 = vpop.f32.mrf.mxu0
      %v2646 = vadd.f32 %v2633, %v2645
      %v2647 = vpop.f32.mrf.mxu0
      %2648 = vdwg.mxu0
      %2649 = vmatpush.bf16.msra.mxu0 %v1877
      %2650 = vmatpush.bf16.msra.mxu0 %v1871
      %2651 = vmatpush.bf16.msra.mxu0 %v1865
      %2652 = vmatpush.bf16.msra.mxu0 %v1859
      %2653 = vmatpush.bf16.msra.mxu0 %v1853
      %2654 = vmatpush.bf16.msra.mxu0 %v1847
      %2655 = vmatpush.bf16.msra.mxu0 %v1841
      %2656 = vmatpush.bf16.msra.mxu0 %v1835
      %2657 = vmatmul.bf16.gmra.mxu0 %v565
      %v2658 = vpop.f32.mrf.mxu0
      %v2659 = vadd.f32 %v2646, %v2658
      %v2660 = vpop.f32.mrf.mxu0
      %2661 = vdwg.mxu0
      %2662 = vmatpush.bf16.msra.mxu0 %v1925
      %2663 = vmatpush.bf16.msra.mxu0 %v1919
      %2664 = vmatpush.bf16.msra.mxu0 %v1913
      %2665 = vmatpush.bf16.msra.mxu0 %v1907
      %2666 = vmatpush.bf16.msra.mxu0 %v1901
      %2667 = vmatpush.bf16.msra.mxu0 %v1895
      %2668 = vmatpush.bf16.msra.mxu0 %v1889
      %2669 = vmatpush.bf16.msra.mxu0 %v1883
      %2670 = vmatmul.bf16.gmra.mxu0 %v566
      %v2671 = vpop.f32.mrf.mxu0
      %v2672 = vadd.f32 %v2659, %v2671
      %v2673 = vpop.f32.mrf.mxu0
      %2674 = vdwg.mxu0
      %2675 = vmatpush.bf16.msra.mxu0 %v1973
      %2676 = vmatpush.bf16.msra.mxu0 %v1967
      %2677 = vmatpush.bf16.msra.mxu0 %v1961
      %2678 = vmatpush.bf16.msra.mxu0 %v1955
      %2679 = vmatpush.bf16.msra.mxu0 %v1949
      %2680 = vmatpush.bf16.msra.mxu0 %v1943
      %2681 = vmatpush.bf16.msra.mxu0 %v1937
      %2682 = vmatpush.bf16.msra.mxu0 %v1931
      %2683 = vmatmul.bf16.gmra.mxu0 %v567
      %v2684 = vpop.f32.mrf.mxu0
      %v2685 = vadd.f32 %v2672, %v2684
      %v2686 = vpop.f32.mrf.mxu0
      %2687 = vdwg.mxu0
      %2688 = vmatpush.bf16.msra.mxu0 %v2021
      %2689 = vmatpush.bf16.msra.mxu0 %v2015
      %2690 = vmatpush.bf16.msra.mxu0 %v2009
      %2691 = vmatpush.bf16.msra.mxu0 %v2003
      %2692 = vmatpush.bf16.msra.mxu0 %v1997
      %2693 = vmatpush.bf16.msra.mxu0 %v1991
      %2694 = vmatpush.bf16.msra.mxu0 %v1985
      %2695 = vmatpush.bf16.msra.mxu0 %v1979
      %2696 = vmatmul.bf16.gmra.mxu0 %v568
      %v2697 = vpop.f32.mrf.mxu0
      %v2698 = vadd.f32 %v2685, %v2697
      %v2699 = vpop.f32.mrf.mxu0
      %2700 = vdwg.mxu0
      %2701 = vmatpush.bf16.msra.mxu0 %v1782
      %2702 = vmatpush.bf16.msra.mxu0 %v1776
      %2703 = vmatpush.bf16.msra.mxu0 %v1770
      %2704 = vmatpush.bf16.msra.mxu0 %v1764
      %2705 = vmatpush.bf16.msra.mxu0 %v1758
      %2706 = vmatpush.bf16.msra.mxu0 %v1752
      %2707 = vmatpush.bf16.msra.mxu0 %v1746
      %2708 = vmatpush.bf16.msra.mxu0 %v1740
      %2709 = vmatmul.bf16.gmra.mxu0 %v563
      %v2710 = vpop.f32.mrf.mxu0
      %v2711 = vadd.f32 %v864, %v2710
      %v2712 = vpop.f32.mrf.mxu0
      %2713 = vdwg.mxu0
      %2714 = vmatpush.bf16.msra.mxu0 %v1830
      %2715 = vmatpush.bf16.msra.mxu0 %v1824
      %2716 = vmatpush.bf16.msra.mxu0 %v1818
      %2717 = vmatpush.bf16.msra.mxu0 %v1812
      %2718 = vmatpush.bf16.msra.mxu0 %v1806
      %2719 = vmatpush.bf16.msra.mxu0 %v1800
      %2720 = vmatpush.bf16.msra.mxu0 %v1794
      %2721 = vmatpush.bf16.msra.mxu0 %v1788
      %2722 = vmatmul.bf16.gmra.mxu0 %v564
      %v2723 = vpop.f32.mrf.mxu0
      %v2724 = vadd.f32 %v2711, %v2723
      %v2725 = vpop.f32.mrf.mxu0
      %2726 = vdwg.mxu0
      %2727 = vmatpush.bf16.msra.mxu0 %v1878
      %2728 = vmatpush.bf16.msra.mxu0 %v1872
      %2729 = vmatpush.bf16.msra.mxu0 %v1866
      %2730 = vmatpush.bf16.msra.mxu0 %v1860
      %2731 = vmatpush.bf16.msra.mxu0 %v1854
      %2732 = vmatpush.bf16.msra.mxu0 %v1848
      %2733 = vmatpush.bf16.msra.mxu0 %v1842
      %2734 = vmatpush.bf16.msra.mxu0 %v1836
      %2735 = vmatmul.bf16.gmra.mxu0 %v565
      %v2736 = vpop.f32.mrf.mxu0
      %v2737 = vadd.f32 %v2724, %v2736
      %v2738 = vpop.f32.mrf.mxu0
      %2739 = vdwg.mxu0
      %2740 = vmatpush.bf16.msra.mxu0 %v1926
      %2741 = vmatpush.bf16.msra.mxu0 %v1920
      %2742 = vmatpush.bf16.msra.mxu0 %v1914
      %2743 = vmatpush.bf16.msra.mxu0 %v1908
      %2744 = vmatpush.bf16.msra.mxu0 %v1902
      %2745 = vmatpush.bf16.msra.mxu0 %v1896
      %2746 = vmatpush.bf16.msra.mxu0 %v1890
      %2747 = vmatpush.bf16.msra.mxu0 %v1884
      %2748 = vmatmul.bf16.gmra.mxu0 %v566
      %v2749 = vpop.f32.mrf.mxu0
      %v2750 = vadd.f32 %v2737, %v2749
      %v2751 = vpop.f32.mrf.mxu0
      %2752 = vdwg.mxu0
      %2753 = vmatpush.bf16.msra.mxu0 %v1974
      %2754 = vmatpush.bf16.msra.mxu0 %v1968
      %2755 = vmatpush.bf16.msra.mxu0 %v1962
      %2756 = vmatpush.bf16.msra.mxu0 %v1956
      %2757 = vmatpush.bf16.msra.mxu0 %v1950
      %2758 = vmatpush.bf16.msra.mxu0 %v1944
      %2759 = vmatpush.bf16.msra.mxu0 %v1938
      %2760 = vmatpush.bf16.msra.mxu0 %v1932
      %2761 = vmatmul.bf16.gmra.mxu0 %v567
      %v2762 = vpop.f32.mrf.mxu0
      %v2763 = vadd.f32 %v2750, %v2762
      %v2764 = vpop.f32.mrf.mxu0
      %2765 = vdwg.mxu0
      %2766 = vmatpush.bf16.msra.mxu0 %v2022
      %2767 = vmatpush.bf16.msra.mxu0 %v2016
      %2768 = vmatpush.bf16.msra.mxu0 %v2010
      %2769 = vmatpush.bf16.msra.mxu0 %v2004
      %2770 = vmatpush.bf16.msra.mxu0 %v1998
      %2771 = vmatpush.bf16.msra.mxu0 %v1992
      %2772 = vmatpush.bf16.msra.mxu0 %v1986
      %2773 = vmatpush.bf16.msra.mxu0 %v1980
      %2774 = vmatmul.bf16.gmra.mxu0 %v568
      %v2775 = vpop.f32.mrf.mxu0
      %v2776 = vadd.f32 %v2763, %v2775
      %v2777 = vpop.f32.mrf.mxu0
      %2778 = vdwg.mxu0
      %v2779 = vtanh.pop %v2386
      %v2780 = vtanh.pop %v2464
      %v2781 = vtanh.pop %v2542
      %v2782 = vtanh.pop %v2620
      %v2783 = vtanh.pop %v2698
      %v2784 = vtanh.pop %v2776
      %v2785 = vpack.c.bf16 %v2779, %v2779
      %v2786 = vpack.c.bf16 %v2780, %v2780
      %v2787 = vpack.c.bf16 %v2781, %v2781
      %v2788 = vpack.c.bf16 %v2782, %v2782
      %v2789 = vpack.c.bf16 %v2783, %v2783
      %v2790 = vpack.c.bf16 %v2784, %v2784
      %v2791 = vld [vmem:[%s3] sm:$0xf]
      %v2792 = vld [vmem:[%s3 + $0x4] sm:$0xf]
      %v2793 = vld [vmem:[%s3 + $0x8] sm:$0xf]
      %v2794 = vld [vmem:[%s3 + $0xc] sm:$0xf]
      %v2795 = vld [vmem:[%s3 + $0x10] sm:$0xf]
      %v2796 = vld [vmem:[%s3 + $0x14] sm:$0xf]
      %v2797 = vld [vmem:[%s3 + $0x18] sm:$0xf]
      %v2798 = vld [vmem:[%s3 + $0x1c] sm:$0xf]
      %v2799 = vld [vmem:[%s3 + $0x20] sm:$0xf]
      %v2800 = vld [vmem:[%s3 + $0x24] sm:$0xf]
      %v2801 = vld [vmem:[%s3 + $0x28] sm:$0xf]
      %v2802 = vld [vmem:[%s3 + $0x2c] sm:$0xf]
      %v2803 = vld [vmem:[%s3 + $0x30] sm:$0xf]
      %v2804 = vld [vmem:[%s3 + $0x34] sm:$0xf]
      %v2805 = vld [vmem:[%s3 + $0x38] sm:$0xf]
      %v2806 = vld [vmem:[%s3 + $0x3c] sm:$0xf]
      %v2807 = vld [vmem:[%s3 + $0x40] sm:$0xf]
      %v2808 = vld [vmem:[%s3 + $0x44] sm:$0xf]
      %v2809 = vld [vmem:[%s3 + $0x48] sm:$0xf]
      %v2810 = vld [vmem:[%s3 + $0x4c] sm:$0xf]
      %v2811 = vld [vmem:[%s3 + $0x50] sm:$0xf]
      %v2812 = vld [vmem:[%s3 + $0x54] sm:$0xf]
      %v2813 = vld [vmem:[%s3 + $0x58] sm:$0xf]
      %v2814 = vld [vmem:[%s3 + $0x5c] sm:$0xf]
      %v2815 = vld [vmem:[%s3 + $0x60] sm:$0xf]
      %v2816 = vld [vmem:[%s3 + $0x64] sm:$0xf]
      %v2817 = vld [vmem:[%s3 + $0x68] sm:$0xf]
      %v2818 = vld [vmem:[%s3 + $0x6c] sm:$0xf]
      %v2819 = vld [vmem:[%s3 + $0x70] sm:$0xf]
      %v2820 = vld [vmem:[%s3 + $0x74] sm:$0xf]
      %v2821 = vld [vmem:[%s3 + $0x78] sm:$0xf]
      %v2822 = vld [vmem:[%s3 + $0x7c] sm:$0xf]
      %v2823 = vld [vmem:[%s3 + $0x80] sm:$0xf]
      %v2824 = vld [vmem:[%s3 + $0x84] sm:$0xf]
      %v2825 = vld [vmem:[%s3 + $0x88] sm:$0xf]
      %v2826 = vld [vmem:[%s3 + $0x8c] sm:$0xf]
      %v2827 = vld [vmem:[%s3 + $0x90] sm:$0xf]
      %v2828 = vld [vmem:[%s3 + $0x94] sm:$0xf]
      %v2829 = vld [vmem:[%s3 + $0x98] sm:$0xf]
      %v2830 = vld [vmem:[%s3 + $0x9c] sm:$0xf]
      %v2831 = vld [vmem:[%s3 + $0xa0] sm:$0xf]
      %v2832 = vld [vmem:[%s3 + $0xa4] sm:$0xf]
      %v2833 = vld [vmem:[%s3 + $0xa8] sm:$0xf]
      %v2834 = vld [vmem:[%s3 + $0xac] sm:$0xf]
      %v2835 = vld [vmem:[%s3 + $0xb0] sm:$0xf]
      %v2836 = vld [vmem:[%s3 + $0xb4] sm:$0xf]
      %v2837 = vld [vmem:[%s3 + $0xb8] sm:$0xf]
      %v2838 = vld [vmem:[%s3 + $0xbc] sm:$0xf]
      %v2839 = vld [vmem:[%s3 + $0xc0] sm:$0xf]
      %v2840 = vld [vmem:[%s3 + $0xc4] sm:$0xf]
      %v2841 = vld [vmem:[%s3 + $0xc8] sm:$0xf]
      %v2842 = vld [vmem:[%s3 + $0xcc] sm:$0xf]
      %v2843 = vld [vmem:[%s3 + $0xd0] sm:$0xf]
      %v2844 = vld [vmem:[%s3 + $0xd4] sm:$0xf]
      %v2845 = vld [vmem:[%s3 + $0xd8] sm:$0xf]
      %v2846 = vld [vmem:[%s3 + $0xdc] sm:$0xf]
      %v2847 = vld [vmem:[%s3 + $0xe0] sm:$0xf]
      %v2848 = vld [vmem:[%s3 + $0xe4] sm:$0xf]
      %v2849 = vld [vmem:[%s3 + $0xe8] sm:$0xf]
      %v2850 = vld [vmem:[%s3 + $0xec] sm:$0xf]
      %v2851 = vld [vmem:[%s3 + $0xf0] sm:$0xf]
      %v2852 = vld [vmem:[%s3 + $0xf4] sm:$0xf]
      %v2853 = vld [vmem:[%s3 + $0xf8] sm:$0xf]
      %v2854 = vld [vmem:[%s3 + $0xfc] sm:$0xf]
      %v2855 = vld [vmem:[%s3 + $0x100] sm:$0xf]
      %v2856 = vld [vmem:[%s3 + $0x104] sm:$0xf]
      %v2857 = vld [vmem:[%s3 + $0x108] sm:$0xf]
      %v2858 = vld [vmem:[%s3 + $0x10c] sm:$0xf]
      %v2859 = vld [vmem:[%s3 + $0x110] sm:$0xf]
      %v2860 = vld [vmem:[%s3 + $0x114] sm:$0xf]
      %v2861 = vld [vmem:[%s3 + $0x118] sm:$0xf]
      %v2862 = vld [vmem:[%s3 + $0x11c] sm:$0xf]
      %v2863 = vld [vmem:[%s3 + $0x120] sm:$0xf]
      %v2864 = vld [vmem:[%s3 + $0x124] sm:$0xf]
      %v2865 = vld [vmem:[%s3 + $0x128] sm:$0xf]
      %v2866 = vld [vmem:[%s3 + $0x12c] sm:$0xf]
      %v2867 = vld [vmem:[%s3 + $0x130] sm:$0xf]
      %v2868 = vld [vmem:[%s3 + $0x134] sm:$0xf]
      %v2869 = vld [vmem:[%s3 + $0x138] sm:$0xf]
      %v2870 = vld [vmem:[%s3 + $0x13c] sm:$0xf]
      %v2871 = vld [vmem:[%s3 + $0x140] sm:$0xf]
      %v2872 = vld [vmem:[%s3 + $0x144] sm:$0xf]
      %v2873 = vld [vmem:[%s3 + $0x148] sm:$0xf]
      %v2874 = vld [vmem:[%s3 + $0x14c] sm:$0xf]
      %v2875 = vld [vmem:[%s3 + $0x150] sm:$0xf]
      %v2876 = vld [vmem:[%s3 + $0x154] sm:$0xf]
      %v2877 = vld [vmem:[%s3 + $0x158] sm:$0xf]
      %v2878 = vld [vmem:[%s3 + $0x15c] sm:$0xf]
      %v2879 = vld [vmem:[%s3 + $0x160] sm:$0xf]
      %v2880 = vld [vmem:[%s3 + $0x164] sm:$0xf]
      %v2881 = vld [vmem:[%s3 + $0x168] sm:$0xf]
      %v2882 = vld [vmem:[%s3 + $0x16c] sm:$0xf]
      %v2883 = vld [vmem:[%s3 + $0x170] sm:$0xf]
      %v2884 = vld [vmem:[%s3 + $0x174] sm:$0xf]
      %v2885 = vld [vmem:[%s3 + $0x178] sm:$0xf]
      %v2886 = vld [vmem:[%s3 + $0x17c] sm:$0xf]
      %v2887 = vld [vmem:[#allocation7] sm:$0x1]
      %v2889 = vperm.slane %v2887, 0
      %v2987 = vunpack.c.l.b16 %v2791
      %v2988 = vunpack.c.l.b16 %v2792
      %v2989 = vunpack.c.l.b16 %v2793
      %v2990 = vunpack.c.l.b16 %v2794
      %v2991 = vunpack.c.l.b16 %v2795
      %v2992 = vunpack.c.l.b16 %v2796
      %v2993 = vunpack.c.l.b16 %v2797
      %v2994 = vunpack.c.l.b16 %v2798
      %v2995 = vunpack.c.l.b16 %v2799
      %v2996 = vunpack.c.l.b16 %v2800
      %v2997 = vunpack.c.l.b16 %v2801
      %v2998 = vunpack.c.l.b16 %v2802
      %v2999 = vunpack.c.l.b16 %v2803
      %v3000 = vunpack.c.l.b16 %v2804
      %v3001 = vunpack.c.l.b16 %v2805
      %v3002 = vunpack.c.l.b16 %v2806
      %v3003 = vunpack.c.l.b16 %v2807
      %v3004 = vunpack.c.l.b16 %v2808
      %v3005 = vunpack.c.l.b16 %v2809
      %v3006 = vunpack.c.l.b16 %v2810
      %v3007 = vunpack.c.l.b16 %v2811
      %v3008 = vunpack.c.l.b16 %v2812
      %v3009 = vunpack.c.l.b16 %v2813
      %v3010 = vunpack.c.l.b16 %v2814
      %v3011 = vunpack.c.l.b16 %v2815
      %v3012 = vunpack.c.l.b16 %v2816
      %v3013 = vunpack.c.l.b16 %v2817
      %v3014 = vunpack.c.l.b16 %v2818
      %v3015 = vunpack.c.l.b16 %v2819
      %v3016 = vunpack.c.l.b16 %v2820
      %v3017 = vunpack.c.l.b16 %v2821
      %v3018 = vunpack.c.l.b16 %v2822
      %v3019 = vunpack.c.l.b16 %v2823
      %v3020 = vunpack.c.l.b16 %v2824
      %v3021 = vunpack.c.l.b16 %v2825
      %v3022 = vunpack.c.l.b16 %v2826
      %v3023 = vunpack.c.l.b16 %v2827
      %v3024 = vunpack.c.l.b16 %v2828
      %v3025 = vunpack.c.l.b16 %v2829
      %v3026 = vunpack.c.l.b16 %v2830
      %v3027 = vunpack.c.l.b16 %v2831
      %v3028 = vunpack.c.l.b16 %v2832
      %v3029 = vunpack.c.l.b16 %v2833
      %v3030 = vunpack.c.l.b16 %v2834
      %v3031 = vunpack.c.l.b16 %v2835
      %v3032 = vunpack.c.l.b16 %v2836
      %v3033 = vunpack.c.l.b16 %v2837
      %v3034 = vunpack.c.l.b16 %v2838
      %v3035 = vunpack.c.l.b16 %v2839
      %v3036 = vunpack.c.l.b16 %v2840
      %v3037 = vunpack.c.l.b16 %v2841
      %v3038 = vunpack.c.l.b16 %v2842
      %v3039 = vunpack.c.l.b16 %v2843
      %v3040 = vunpack.c.l.b16 %v2844
      %v3041 = vunpack.c.l.b16 %v2845
      %v3042 = vunpack.c.l.b16 %v2846
      %v3043 = vunpack.c.l.b16 %v2847
      %v3044 = vunpack.c.l.b16 %v2848
      %v3045 = vunpack.c.l.b16 %v2849
      %v3046 = vunpack.c.l.b16 %v2850
      %v3047 = vunpack.c.l.b16 %v2851
      %v3048 = vunpack.c.l.b16 %v2852
      %v3049 = vunpack.c.l.b16 %v2853
      %v3050 = vunpack.c.l.b16 %v2854
      %v3051 = vunpack.c.l.b16 %v2855
      %v3052 = vunpack.c.l.b16 %v2856
      %v3053 = vunpack.c.l.b16 %v2857
      %v3054 = vunpack.c.l.b16 %v2858
      %v3055 = vunpack.c.l.b16 %v2859
      %v3056 = vunpack.c.l.b16 %v2860
      %v3057 = vunpack.c.l.b16 %v2861
      %v3058 = vunpack.c.l.b16 %v2862
      %v3059 = vunpack.c.l.b16 %v2863
      %v3060 = vunpack.c.l.b16 %v2864
      %v3061 = vunpack.c.l.b16 %v2865
      %v3062 = vunpack.c.l.b16 %v2866
      %v3063 = vunpack.c.l.b16 %v2867
      %v3064 = vunpack.c.l.b16 %v2868
      %v3065 = vunpack.c.l.b16 %v2869
      %v3066 = vunpack.c.l.b16 %v2870
      %v3067 = vunpack.c.l.b16 %v2871
      %v3068 = vunpack.c.l.b16 %v2872
      %v3069 = vunpack.c.l.b16 %v2873
      %v3070 = vunpack.c.l.b16 %v2874
      %v3071 = vunpack.c.l.b16 %v2875
      %v3072 = vunpack.c.l.b16 %v2876
      %v3073 = vunpack.c.l.b16 %v2877
      %v3074 = vunpack.c.l.b16 %v2878
      %v3075 = vunpack.c.l.b16 %v2879
      %v3076 = vunpack.c.l.b16 %v2880
      %v3077 = vunpack.c.l.b16 %v2881
      %v3078 = vunpack.c.l.b16 %v2882
      %v3079 = vunpack.c.l.b16 %v2883
      %v3080 = vunpack.c.l.b16 %v2884
      %v3081 = vunpack.c.l.b16 %v2885
      %v3082 = vunpack.c.l.b16 %v2886
      %v3083 = vpack.c.b16 %v2988, %v2987
      %v3084 = vpack.c.b16 %v2990, %v2989
      %v3085 = vpack.c.b16 %v2992, %v2991
      %v3086 = vpack.c.b16 %v2994, %v2993
      %v3087 = vpack.c.b16 %v2996, %v2995
      %v3088 = vpack.c.b16 %v2998, %v2997
      %v3089 = vpack.c.b16 %v3000, %v2999
      %v3090 = vpack.c.b16 %v3002, %v3001
      %v3091 = vpack.c.b16 %v3004, %v3003
      %v3092 = vpack.c.b16 %v3006, %v3005
      %v3093 = vpack.c.b16 %v3008, %v3007
      %v3094 = vpack.c.b16 %v3010, %v3009
      %v3095 = vpack.c.b16 %v3012, %v3011
      %v3096 = vpack.c.b16 %v3014, %v3013
      %v3097 = vpack.c.b16 %v3016, %v3015
      %v3098 = vpack.c.b16 %v3018, %v3017
      %v3099 = vpack.c.b16 %v3020, %v3019
      %v3100 = vpack.c.b16 %v3022, %v3021
      %v3101 = vpack.c.b16 %v3024, %v3023
      %v3102 = vpack.c.b16 %v3026, %v3025
      %v3103 = vpack.c.b16 %v3028, %v3027
      %v3104 = vpack.c.b16 %v3030, %v3029
      %v3105 = vpack.c.b16 %v3032, %v3031
      %v3106 = vpack.c.b16 %v3034, %v3033
      %v3107 = vpack.c.b16 %v3036, %v3035
      %v3108 = vpack.c.b16 %v3038, %v3037
      %v3109 = vpack.c.b16 %v3040, %v3039
      %v3110 = vpack.c.b16 %v3042, %v3041
      %v3111 = vpack.c.b16 %v3044, %v3043
      %v3112 = vpack.c.b16 %v3046, %v3045
      %v3113 = vpack.c.b16 %v3048, %v3047
      %v3114 = vpack.c.b16 %v3050, %v3049
      %v3115 = vpack.c.b16 %v3052, %v3051
      %v3116 = vpack.c.b16 %v3054, %v3053
      %v3117 = vpack.c.b16 %v3056, %v3055
      %v3118 = vpack.c.b16 %v3058, %v3057
      %v3119 = vpack.c.b16 %v3060, %v3059
      %v3120 = vpack.c.b16 %v3062, %v3061
      %v3121 = vpack.c.b16 %v3064, %v3063
      %v3122 = vpack.c.b16 %v3066, %v3065
      %v3123 = vpack.c.b16 %v3068, %v3067
      %v3124 = vpack.c.b16 %v3070, %v3069
      %v3125 = vpack.c.b16 %v3072, %v3071
      %v3126 = vpack.c.b16 %v3074, %v3073
      %v3127 = vpack.c.b16 %v3076, %v3075
      %v3128 = vpack.c.b16 %v3078, %v3077
      %v3129 = vpack.c.b16 %v3080, %v3079
      %v3130 = vpack.c.b16 %v3082, %v3081
      %3179 = vmatpush.bf16.msra.mxu0 %v3090
      %3180 = vmatpush.bf16.msra.mxu0 %v3089
      %3181 = vmatpush.bf16.msra.mxu0 %v3088
      %3182 = vmatpush.bf16.msra.mxu0 %v3087
      %3183 = vmatpush.bf16.msra.mxu0 %v3086
      %3184 = vmatpush.bf16.msra.mxu0 %v3085
      %3185 = vmatpush.bf16.msra.mxu0 %v3084
      %3186 = vmatpush.bf16.msra.mxu0 %v3083
      %3187 = vmatmul.bf16.gmra.mxu0 %v2785
      %v3188 = vpop.f32.mrf.mxu0
      %v3189 = vadd.f32 %v2889, %v3188
      %v3190 = vpop.f32.mrf.mxu0
      %3191 = vdwg.mxu0
      %3192 = vmatpush.bf16.msra.mxu0 %v3098
      %3193 = vmatpush.bf16.msra.mxu0 %v3097
      %3194 = vmatpush.bf16.msra.mxu0 %v3096
      %3195 = vmatpush.bf16.msra.mxu0 %v3095
      %3196 = vmatpush.bf16.msra.mxu0 %v3094
      %3197 = vmatpush.bf16.msra.mxu0 %v3093
      %3198 = vmatpush.bf16.msra.mxu0 %v3092
      %3199 = vmatpush.bf16.msra.mxu0 %v3091
      %3200 = vmatmul.bf16.gmra.mxu0 %v2786
      %v3201 = vpop.f32.mrf.mxu0
      %v3202 = vadd.f32 %v3189, %v3201
      %v3203 = vpop.f32.mrf.mxu0
      %3204 = vdwg.mxu0
      %3205 = vmatpush.bf16.msra.mxu0 %v3106
      %3206 = vmatpush.bf16.msra.mxu0 %v3105
      %3207 = vmatpush.bf16.msra.mxu0 %v3104
      %3208 = vmatpush.bf16.msra.mxu0 %v3103
      %3209 = vmatpush.bf16.msra.mxu0 %v3102
      %3210 = vmatpush.bf16.msra.mxu0 %v3101
      %3211 = vmatpush.bf16.msra.mxu0 %v3100
      %3212 = vmatpush.bf16.msra.mxu0 %v3099
      %3213 = vmatmul.bf16.gmra.mxu0 %v2787
      %v3214 = vpop.f32.mrf.mxu0
      %v3215 = vadd.f32 %v3202, %v3214
      %v3216 = vpop.f32.mrf.mxu0
      %3217 = vdwg.mxu0
      %3218 = vmatpush.bf16.msra.mxu0 %v3114
      %3219 = vmatpush.bf16.msra.mxu0 %v3113
      %3220 = vmatpush.bf16.msra.mxu0 %v3112
      %3221 = vmatpush.bf16.msra.mxu0 %v3111
      %3222 = vmatpush.bf16.msra.mxu0 %v3110
      %3223 = vmatpush.bf16.msra.mxu0 %v3109
      %3224 = vmatpush.bf16.msra.mxu0 %v3108
      %3225 = vmatpush.bf16.msra.mxu0 %v3107
      %3226 = vmatmul.bf16.gmra.mxu0 %v2788
      %v3227 = vpop.f32.mrf.mxu0
      %v3228 = vadd.f32 %v3215, %v3227
      %v3229 = vpop.f32.mrf.mxu0
      %3230 = vdwg.mxu0
      %3231 = vmatpush.bf16.msra.mxu0 %v3122
      %3232 = vmatpush.bf16.msra.mxu0 %v3121
      %3233 = vmatpush.bf16.msra.mxu0 %v3120
      %3234 = vmatpush.bf16.msra.mxu0 %v3119
      %3235 = vmatpush.bf16.msra.mxu0 %v3118
      %3236 = vmatpush.bf16.msra.mxu0 %v3117
      %3237 = vmatpush.bf16.msra.mxu0 %v3116
      %3238 = vmatpush.bf16.msra.mxu0 %v3115
      %3239 = vmatmul.bf16.gmra.mxu0 %v2789
      %v3240 = vpop.f32.mrf.mxu0
      %v3241 = vadd.f32 %v3228, %v3240
      %v3242 = vpop.f32.mrf.mxu0
      %3243 = vdwg.mxu0
      %3244 = vmatpush.bf16.msra.mxu0 %v3130
      %3245 = vmatpush.bf16.msra.mxu0 %v3129
      %3246 = vmatpush.bf16.msra.mxu0 %v3128
      %3247 = vmatpush.bf16.msra.mxu0 %v3127
      %3248 = vmatpush.bf16.msra.mxu0 %v3126
      %3249 = vmatpush.bf16.msra.mxu0 %v3125
      %3250 = vmatpush.bf16.msra.mxu0 %v3124
      %3251 = vmatpush.bf16.msra.mxu0 %v3123
      %3252 = vmatmul.bf16.gmra.mxu0 %v2790
      %v3253 = vpop.f32.mrf.mxu0
      %v3254 = vadd.f32 %v3241, %v3253
      %v3255 = vpop.f32.mrf.mxu0
      %3256 = vdwg.mxu0
      %v3257 = vmax.f32 %v3254, 0.0
      %3258 = vst [vmem:[%s5] sm:$0xff] %v3257
    $region41: #{bert_classifier_forward.1} parent=1 // pred_fallthru
      _
    // Predicated region
    $region42: #{bert_classifier_forward.1} parent=1 // pred_check
      _
    $region43: #{bert_classifier_forward.1} parent=1 // pred_check_branch
      %3260 = sbr.rel (0) target = $region45
    $region44: #{bert_classifier_forward.1} parent=1 // pred_region
      _
    $region45: #{bert_classifier_forward.1} parent=1 // pred_fallthru
      _
    // Predicated region
    $region46: #{bert_classifier_forward.1} parent=1 // pred_check
      _
    $region47: #{bert_classifier_forward.1} parent=1 // pred_check_branch
      %3262 = sbr.rel (0) target = $region49
    $region48: #{bert_classifier_forward.1} parent=1 // pred_region
      _
    $region49: #{bert_classifier_forward.1} parent=1 // pred_fallthru
      _
    %3263 = vsyncpa [#allocation4], 1
    %3264 = vsyncpa [#allocation6], 1

</llo_original>
